<compile_context>
chip_gen: v5e
topology: v5e:2x2
jax: 0.10.0
libtpu: 0.0.40
codegen_flags: <defaults>
</compile_context>

<pallas_src>
import functools
import math

import jax
import jax.numpy as jnp
from jax.experimental import pallas as pl
from jax.experimental.pallas import tpu as pltpu


def _make_memory_model_kernel(B, T, C_in, channels, kernel_sizes, dilations,
                              eps=1e-5):
    n_layers = len(channels)
    pads = tuple((kernel_sizes[l] - 1) * dilations[l] for l in range(n_layers))
    louts = tuple(T + p for p in pads)          # un-chomped conv output length per layer
    ns = tuple(B * L for L in louts)            # folded (batch*length) lane extent

    def kernel(*refs):
        x_slab_ref = refs[0]                               # (C_in, B*L0 + pad0) bf16
        layer_refs = refs[1:1 + 3 * n_layers]              # per layer: w (K,Co,Ci) bf16, gamma, beta f32
        aw_ref = refs[1 + 3 * n_layers]                    # (C_last, B*L_last) f32
        ab_ref = refs[2 + 3 * n_layers]                    # (1, B*L_last) f32
        o_ref = refs[3 + 3 * n_layers]                     # (B, C_last) f32
        slab_refs = refs[4 + 3 * n_layers:]                # bf16 slabs for layers 1..n-1

        def conv_bn_relu(slab, l):
            """Dilated causal conv (per-tap 2D MXU matmul, batch folded into lanes)
            + one-pass training-mode BatchNorm + ReLU.  Returns (C_out_l, B*L_out_l) f32."""
            K, d, N = kernel_sizes[l], dilations[l], ns[l]
            w_ref, g_ref, b_ref = layer_refs[3 * l:3 * l + 3]
            y = None
            for j in range(K):                              # per-tap unbatched matmul
                xs = slab[:, j * d: j * d + N]              # (C_in_l, N) bf16
                t = jnp.dot(w_ref[j], xs, preferred_element_type=jnp.float32)
                y = t if y is None else y + t               # (C_out_l, N) f32
            # NOTE: no conv bias — cancelled by the training-mode BN mean subtraction.
            inv_n = 1.0 / N
            s = jnp.sum(y, axis=1, keepdims=True)           # (C_out, 1)
            ss = jnp.sum(y * y, axis=1, keepdims=True)      # (C_out, 1)
            mean = s * inv_n
            var = ss * inv_n - mean * mean                  # biased batch variance
            inv = jax.lax.rsqrt(var + eps)
            scale = g_ref[...] * inv
            shift = b_ref[...] - mean * scale
            return jnp.maximum(y * scale + shift, 0.0)

        # ---- layer 0 reads the wrapper-built padded slab directly ----
        h = conv_bn_relu(x_slab_ref, 0)

        # ---- layers 1..n-1: write chomped output into the next lane-dense slab ----
        for l in range(1, n_layers):
            buf = slab_refs[l - 1]                          # (C_{l-1}, B*L_l + pad_l) bf16
            pad, L, L_prev = pads[l], louts[l], louts[l - 1]
            c_prev = channels[l - 1]
            # zero only the shared pad margins (B+1 of them)
            for b in range(B + 1):
                buf[:, b * L: b * L + pad] = jnp.zeros((c_prev, pad), dtype=buf.dtype)
            # Chomp1d fused with the store: only the first T columns per batch
            for b in range(B):
                buf[:, b * L + pad: b * L + pad + T] = (
                    h[:, b * L_prev: b * L_prev + T].astype(buf.dtype))
            h = conv_bn_relu(buf, l)

        # ---- SelfAttention pooling on (C_last, B*L_last); chomped cols never summed ----
        scores = jnp.sum(h * aw_ref[...], axis=0, keepdims=True) + ab_ref[...]  # (1, N)
        att = jnp.tanh(scores)
        weighted = h * att                                   # (C_last, N) f32
        L_last = louts[-1]
        for b in range(B):
            o_ref[b, :] = jnp.sum(
                weighted[:, b * L_last: b * L_last + T], axis=1).astype(o_ref.dtype)

    return kernel


@functools.partial(jax.jit, static_argnames=("dilation_base",))
def memory_model_forward(x, conv_params, attn_params, dilation_base=3):
    """Fused MemoryModel.forward: x (B, T, C_in) -> (B, trace_hiddens[-1])."""
    B, T, C_in = x.shape
    n_layers = len(conv_params)
    channels = tuple(int(w.shape[0]) for (w, _, _, _) in conv_params)
    ksizes = tuple(int(w.shape[2]) for (w, _, _, _) in conv_params)
    dils = tuple(dilation_base ** i for i in range(n_layers))
    pads = tuple((k - 1) * d for k, d in zip(ksizes, dils))
    louts = tuple(T + p for p in pads)
    C_last, L_last, N_last = channels[-1], louts[-1], B * louts[-1]

    # Layer-0 padded slab (C_in, B*L0 + pad0): the permute(0,2,1) and the per-batch
    # zero padding are pure layout plumbing, done by XLA on a ~10 KB array.  Adjacent
    # batches share pad columns (right pad of b == left pad of b+1).
    pad0, L0 = pads[0], louts[0]
    xt = jnp.transpose(x, (2, 0, 1)).astype(jnp.float32)       # (C_in, B, T)
    xp = jnp.pad(xt, ((0, 0), (0, 0), (pad0, 0)))              # left pad per batch
    x_slab = jnp.pad(xp.reshape(C_in, B * L0), ((0, 0), (0, pad0))).astype(jnp.bfloat16)

    # Per-layer params.  Conv bias intentionally omitted (cancelled by training-mode BN).
    layer_args = []
    for (w, _bias, gamma, beta) in conv_params:
        cout = int(w.shape[0])
        layer_args.append(jnp.transpose(w, (2, 0, 1)).astype(jnp.bfloat16))  # (K, Cout, Cin)
        layer_args.append(gamma.reshape(cout, 1).astype(jnp.float32))
        layer_args.append(beta.reshape(cout, 1).astype(jnp.float32))

    # Attention params laid out lane-dense to match the slab column layout
    # (col = b*L_last + t); columns with t >= T (chomped) are zero and never summed.
    atten_w, atten_bias = attn_params                           # (T, C_last, 1), (T, 1, 1)
    aw_cl = jnp.transpose(atten_w[:, :, 0], (1, 0))             # (C_last, T)
    aw = jnp.tile(jnp.pad(aw_cl, ((0, 0), (0, L_last - T))), (1, B)).astype(jnp.float32)
    ab = jnp.tile(jnp.pad(atten_bias.reshape(1, T), ((0, 0), (0, L_last - T))),
                  (1, B)).astype(jnp.float32)

    # VMEM scratch slabs for layers 1..n-1 (bf16 -> half the VMEM footprint).
    scratch = [pltpu.VMEM((channels[l - 1], B * louts[l] + pads[l]), jnp.bfloat16)
               for l in range(1, n_layers)]

    # Advisory cost estimate for XLA's scheduler.
    flops = 0
    bytes_accessed = C_in * (B * L0 + pad0) * 2 + B * C_last * 4
    for l in range(n_layers):
        cin_l = C_in if l == 0 else channels[l - 1]
        flops += 2 * ksizes[l] * cin_l * channels[l] * B * louts[l]
        bytes_accessed += 2 * ksizes[l] * channels[l] * cin_l + 8 * channels[l]
    flops += 4 * C_last * B * T
    bytes_accessed += 4 * C_last * N_last + 4 * N_last

    kernel = _make_memory_model_kernel(B, T, C_in, channels, ksizes, dils)
    vmem = pl.BlockSpec(memory_space=pltpu.MemorySpace.VMEM)
    n_inputs = 1 + 3 * n_layers + 2
    out = pl.pallas_call(
        kernel,
        out_shape=jax.ShapeDtypeStruct((B, C_last), jnp.float32),
        in_specs=[vmem] * n_inputs,
        out_specs=vmem,
        scratch_shapes=scratch,
        cost_estimate=pl.CostEstimate(flops=flops, transcendentals=B * T,
                                      bytes_accessed=bytes_accessed),
    )(x_slab, *layer_args, aw, ab)
    return out


def init_memory_model_params(key, input_dim, trace_hiddens, trace_kernel_sizes,
                             chunk_length):
    """Deterministic synthetic parameters mirroring the PyTorch module's shapes."""
    conv_params = []
    for i, K in enumerate(trace_kernel_sizes):
        in_ch = input_dim if i == 0 else trace_hiddens[i - 1]
        out_ch = trace_hiddens[i]
        key, kw, kb, kg, kbt = jax.random.split(key, 5)
        w = jax.random.normal(kw, (out_ch, in_ch, K), jnp.float32) * 0.1
        b = jax.random.normal(kb, (out_ch,), jnp.float32) * 0.1
        gamma = 1.0 + 0.1 * jax.random.normal(kg, (out_ch,), jnp.float32)
        beta = 0.1 * jax.random.normal(kbt, (out_ch,), jnp.float32)
        conv_params.append((w, b, gamma, beta))
    out_dim = trace_hiddens[-1]
    stdv = math.sqrt(6.0 / (out_dim + 1))            # glorot, as in SelfAttention
    key, ka, kab = jax.random.split(key, 3)
    atten_w = jax.random.uniform(ka, (chunk_length, out_dim, 1), jnp.float32,
                                 minval=-stdv, maxval=stdv)
    atten_bias = 0.1 * jax.random.normal(kab, (chunk_length, 1, 1), jnp.float32)
    return conv_params, (atten_w, atten_bias)


def _reference_forward(x, conv_params, attn_params, dilation_base=3, eps=1e-5,
                       use_conv_bias=True, mirror_kernel=False):
    """Pure-JAX mirror of MemoryModel.forward (training-mode BatchNorm), no Pallas.

    mirror_kernel=True reproduces the kernel's numerics (bf16 matmul operands,
    one-pass BN, no conv bias) for a tight check; False is the PyTorch-faithful
    f32 reference including the Conv1d bias."""
    B, T, _ = x.shape
    h = jnp.transpose(x, (0, 2, 1)).astype(jnp.float32)            # (B, C, T)
    for i, (w, b, gamma, beta) in enumerate(conv_params):
        d = dilation_base ** i
        Cout, Cin, K = w.shape
        pad = (K - 1) * d
        L_out = T + pad
        if mirror_kernel:
            xq = h.astype(jnp.bfloat16).astype(jnp.float32)
            wq = w.astype(jnp.bfloat16).astype(jnp.float32)
        else:
            xq, wq = h, w.astype(jnp.float32)
        xp = jnp.pad(xq, ((0, 0), (0, 0), (pad, pad)))
        y = jnp.zeros((B, Cout, L_out), jnp.float32)
        for j in range(K):
            y = y + jnp.einsum('oc,bcl->bol', wq[:, :, j], xp[:, :, j * d: j * d + L_out])
        if use_conv_bias and not mirror_kernel:
            y = y + b[None, :, None]
        mean = jnp.mean(y, axis=(0, 2), keepdims=True)
        if mirror_kernel:
            var = jnp.mean(y * y, axis=(0, 2), keepdims=True) - mean * mean
        else:
            var = jnp.mean((y - mean) ** 2, axis=(0, 2), keepdims=True)
        y = (y - mean) * jax.lax.rsqrt(var + eps)
        y = y * gamma[None, :, None] + beta[None, :, None]
        y = jnp.maximum(y, 0.0)
        h = y[:, :, :T]                                            # Chomp1d
    hidden = jnp.transpose(h, (0, 2, 1))                           # (B, T, C_last)
    atten_w, atten_bias = attn_params
    scores = jnp.einsum('btc,tc->bt', hidden, atten_w[:, :, 0]) + atten_bias[:, 0, 0][None, :]
    att = jnp.tanh(scores)
    return jnp.einsum('bt,btc->bc', att, hidden)


if __name__ == "__main__":
    # Config consistent with MemoryModel defaults:
    #   input_dim=20, trace_hiddens=[32, 64], trace_kernel_sizes=[3, 3],
    #   chunk_length=30 (= sequence length), ConvNet dilation base = 3, self_attn=True.
    B = 4
    input_dim = 20
    trace_hiddens = [32, 64]
    trace_kernel_sizes = [3, 3]
    chunk_length = 30

    key = jax.random.PRNGKey(0)
    key, kx = jax.random.split(key)
    x = jax.random.normal(kx, (B, chunk_length, input_dim), jnp.float32)
    conv_params, attn_params = init_memory_model_params(
        key, input_dim, trace_hiddens, trace_kernel_sizes, chunk_length)

    out = memory_model_forward(x, conv_params, attn_params, dilation_base=3)
    out = jax.block_until_ready(out)
    assert out.shape == (B, trace_hiddens[-1]), out.shape

    # 1) Tight check against a reference that mirrors the kernel's numerics
    #    (bf16 matmul operands, one-pass BN stats, no conv bias).
    ref_mirror = _reference_forward(x, conv_params, attn_params, dilation_base=3,
                                    use_conv_bias=False, mirror_kernel=True)
    assert jnp.allclose(out, ref_mirror, atol=3e-3, rtol=3e-3), \
        float(jnp.max(jnp.abs(out - ref_mirror)))

    # 2) PyTorch-faithful f32 reference WITH the conv bias (bias cancels under
    #    training-mode BN).  The kernel feeds the MXU bf16 operands, so compare at
    #    bf16-level accuracy relative to the overall output scale.
    ref = _reference_forward(x, conv_params, attn_params, dilation_base=3,
                             use_conv_bias=True, mirror_kernel=False)
    scale = max(float(jnp.max(jnp.abs(ref))), 1.0)
    err = float(jnp.max(jnp.abs(out - ref)))
    assert err <= 5e-2 * scale, (err, scale)

    print("KERNEL_OK")
</pallas_src>

<mosaic_0001>
module attributes {stable_mosaic.version = 11 : i64} {
  func.func @kernel(%arg0: memref<20x130xbf16, #tpu.memory_space<vmem>>, %arg1: memref<3x32x20xbf16, #tpu.memory_space<vmem>>, %arg2: memref<32x1xf32, #tpu.memory_space<vmem>>, %arg3: memref<32x1xf32, #tpu.memory_space<vmem>>, %arg4: memref<3x64x32xbf16, #tpu.memory_space<vmem>>, %arg5: memref<64x1xf32, #tpu.memory_space<vmem>>, %arg6: memref<64x1xf32, #tpu.memory_space<vmem>>, %arg7: memref<64x144xf32, #tpu.memory_space<vmem>>, %arg8: memref<1x144xf32, #tpu.memory_space<vmem>>, %arg9: memref<4x64xf32, #tpu.memory_space<vmem>>, %arg10: memref<32x150xbf16, #tpu.memory_space<vmem>>) attributes {dimension_semantics = [], scalar_prefetch = 0 : i64, scratch_operands = 1 : i64, tpu.core_type = #tpu.core_type<tc>} {
    %c0 = arith.constant 0 : index
    %c0_0 = arith.constant 0 : index
    %0 = vector.load %arg0[%c0, %c0_0] : memref<20x130xbf16, #tpu.memory_space<vmem>>, vector<20x128xbf16>
    %c0_1 = arith.constant 0 : index
    %c0_2 = arith.constant 0 : index
    %c0_3 = arith.constant 0 : index
    %1 = vector.load %arg1[%c0_1, %c0_2, %c0_3] : memref<3x32x20xbf16, #tpu.memory_space<vmem>>, vector<1x32x20xbf16>
    %2 = vector.shape_cast %1 : vector<1x32x20xbf16> to vector<32x20xbf16>
    %cst = arith.constant dense<0.000000e+00> : vector<32x128xf32>
    %3 = tpu.matmul %2, %0, %cst {dimension_numbers = #tpu.dot_dimension_numbers<[1], [0], [0], [1], [0, 0, 1, 1], [], []>} : vector<32x20xbf16>, vector<20x128xbf16>, vector<32x128xf32> -> vector<32x128xf32>
    %c0_4 = arith.constant 0 : index
    %c1 = arith.constant 1 : index
    %4 = vector.load %arg0[%c0_4, %c1] : memref<20x130xbf16, #tpu.memory_space<vmem>>, vector<20x128xbf16>
    %c1_5 = arith.constant 1 : index
    %c0_6 = arith.constant 0 : index
    %c0_7 = arith.constant 0 : index
    %5 = vector.load %arg1[%c1_5, %c0_6, %c0_7] : memref<3x32x20xbf16, #tpu.memory_space<vmem>>, vector<1x32x20xbf16>
    %6 = vector.shape_cast %5 : vector<1x32x20xbf16> to vector<32x20xbf16>
    %cst_8 = arith.constant dense<0.000000e+00> : vector<32x128xf32>
    %7 = tpu.matmul %6, %4, %cst_8 {dimension_numbers = #tpu.dot_dimension_numbers<[1], [0], [0], [1], [0, 0, 1, 1], [], []>} : vector<32x20xbf16>, vector<20x128xbf16>, vector<32x128xf32> -> vector<32x128xf32>
    %8 = arith.addf %3, %7 : vector<32x128xf32>
    %c0_9 = arith.constant 0 : index
    %c2 = arith.constant 2 : index
    %9 = vector.load %arg0[%c0_9, %c2] : memref<20x130xbf16, #tpu.memory_space<vmem>>, vector<20x128xbf16>
    %c2_10 = arith.constant 2 : index
    %c0_11 = arith.constant 0 : index
    %c0_12 = arith.constant 0 : index
    %10 = vector.load %arg1[%c2_10, %c0_11, %c0_12] : memref<3x32x20xbf16, #tpu.memory_space<vmem>>, vector<1x32x20xbf16>
    %11 = vector.shape_cast %10 : vector<1x32x20xbf16> to vector<32x20xbf16>
    %cst_13 = arith.constant dense<0.000000e+00> : vector<32x128xf32>
    %12 = tpu.matmul %11, %9, %cst_13 {dimension_numbers = #tpu.dot_dimension_numbers<[1], [0], [0], [1], [0, 0, 1, 1], [], []>} : vector<32x20xbf16>, vector<20x128xbf16>, vector<32x128xf32> -> vector<32x128xf32>
    %13 = arith.addf %8, %12 : vector<32x128xf32>
    %cst_14 = arith.constant dense<0.000000e+00> : vector<32xf32>
    %14 = vector.multi_reduction <add>, %13, %cst_14 [1] : vector<32x128xf32> to vector<32xf32>
    %15 = vector.shape_cast %14 : vector<32xf32> to vector<32x1xf32>
    %16 = arith.mulf %13, %13 : vector<32x128xf32>
    %cst_15 = arith.constant dense<0.000000e+00> : vector<32xf32>
    %17 = vector.multi_reduction <add>, %16, %cst_15 [1] : vector<32x128xf32> to vector<32xf32>
    %18 = vector.shape_cast %17 : vector<32xf32> to vector<32x1xf32>
    %cst_16 = arith.constant 7.812500e-03 : f32
    %19 = vector.broadcast %cst_16 : f32 to vector<32x1xf32>
    %20 = arith.mulf %15, %19 : vector<32x1xf32>
    %cst_17 = arith.constant 7.812500e-03 : f32
    %21 = vector.broadcast %cst_17 : f32 to vector<32x1xf32>
    %22 = arith.mulf %18, %21 : vector<32x1xf32>
    %23 = arith.mulf %20, %20 : vector<32x1xf32>
    %24 = arith.subf %22, %23 : vector<32x1xf32>
    %cst_18 = arith.constant 9.99999974E-6 : f32
    %25 = vector.broadcast %cst_18 : f32 to vector<32x1xf32>
    %26 = arith.addf %24, %25 : vector<32x1xf32>
    %27 = math.rsqrt %26 : vector<32x1xf32>
    %c0_19 = arith.constant 0 : index
    %c0_20 = arith.constant 0 : index
    %28 = vector.load %arg2[%c0_19, %c0_20] : memref<32x1xf32, #tpu.memory_space<vmem>>, vector<32x1xf32>
    %29 = arith.mulf %28, %27 : vector<32x1xf32>
    %c0_21 = arith.constant 0 : index
    %c0_22 = arith.constant 0 : index
    %30 = vector.load %arg3[%c0_21, %c0_22] : memref<32x1xf32, #tpu.memory_space<vmem>>, vector<32x1xf32>
    %31 = arith.mulf %20, %29 : vector<32x1xf32>
    %32 = arith.subf %30, %31 : vector<32x1xf32>
    %33 = vector.broadcast %29 : vector<32x1xf32> to vector<32x128xf32>
    %34 = arith.mulf %13, %33 : vector<32x128xf32>
    %35 = vector.broadcast %32 : vector<32x1xf32> to vector<32x128xf32>
    %36 = arith.addf %34, %35 : vector<32x128xf32>
    %cst_23 = arith.constant 0.000000e+00 : f32
    %37 = vector.broadcast %cst_23 : f32 to vector<32x128xf32>
    %38 = arith.maximumf %36, %37 : vector<32x128xf32>
    %cst_24 = arith.constant 0.000000e+00 : bf16
    %39 = vector.broadcast %cst_24 : bf16 to vector<32x6xbf16>
    %c0_25 = arith.constant 0 : index
    %c0_26 = arith.constant 0 : index
    %40 = vector.load %arg10[%c0_25, %c0_26] : memref<32x150xbf16, #tpu.memory_space<vmem>>, vector<32x6xbf16>
    tpu.vector_store %arg10[%c0_25, %c0_26], %39 {strides = array<i32>} : memref<32x150xbf16, #tpu.memory_space<vmem>>, vector<32x6xbf16>,
    %cst_27 = arith.constant 0.000000e+00 : bf16
    %41 = vector.broadcast %cst_27 : bf16 to vector<32x6xbf16>
    %c0_28 = arith.constant 0 : index
    %c36 = arith.constant 36 : index
    %42 = vector.load %arg10[%c0_28, %c36] : memref<32x150xbf16, #tpu.memory_space<vmem>>, vector<32x6xbf16>
    tpu.vector_store %arg10[%c0_28, %c36], %41 {strides = array<i32>} : memref<32x150xbf16, #tpu.memory_space<vmem>>, vector<32x6xbf16>,
    %cst_29 = arith.constant 0.000000e+00 : bf16
    %43 = vector.broadcast %cst_29 : bf16 to vector<32x6xbf16>
    %c0_30 = arith.constant 0 : index
    %c72 = arith.constant 72 : index
    %44 = vector.load %arg10[%c0_30, %c72] : memref<32x150xbf16, #tpu.memory_space<vmem>>, vector<32x6xbf16>
    tpu.vector_store %arg10[%c0_30, %c72], %43 {strides = array<i32>} : memref<32x150xbf16, #tpu.memory_space<vmem>>, vector<32x6xbf16>,
    %cst_31 = arith.constant 0.000000e+00 : bf16
    %45 = vector.broadcast %cst_31 : bf16 to vector<32x6xbf16>
    %c0_32 = arith.constant 0 : index
    %c108 = arith.constant 108 : index
    %46 = vector.load %arg10[%c0_32, %c108] : memref<32x150xbf16, #tpu.memory_space<vmem>>, vector<32x6xbf16>
    tpu.vector_store %arg10[%c0_32, %c108], %45 {strides = array<i32>} : memref<32x150xbf16, #tpu.memory_space<vmem>>, vector<32x6xbf16>,
    %cst_33 = arith.constant 0.000000e+00 : bf16
    %47 = vector.broadcast %cst_33 : bf16 to vector<32x6xbf16>
    %c0_34 = arith.constant 0 : index
    %c144 = arith.constant 144 : index
    %48 = vector.load %arg10[%c0_34, %c144] : memref<32x150xbf16, #tpu.memory_space<vmem>>, vector<32x6xbf16>
    tpu.vector_store %arg10[%c0_34, %c144], %47 {strides = array<i32>} : memref<32x150xbf16, #tpu.memory_space<vmem>>, vector<32x6xbf16>,
    %49 = vector.extract_strided_slice %38 {offsets = [0, 0], sizes = [32, 30], strides = [1, 1]} : vector<32x128xf32> to vector<32x30xf32>
    %50 = arith.truncf %49 : vector<32x30xf32> to vector<32x30xbf16>
    %c0_35 = arith.constant 0 : index
    %c6 = arith.constant 6 : index
    %51 = vector.load %arg10[%c0_35, %c6] : memref<32x150xbf16, #tpu.memory_space<vmem>>, vector<32x30xbf16>
    tpu.vector_store %arg10[%c0_35, %c6], %50 {strides = array<i32>} : memref<32x150xbf16, #tpu.memory_space<vmem>>, vector<32x30xbf16>,
    %52 = vector.extract_strided_slice %38 {offsets = [0, 32], sizes = [32, 30], strides = [1, 1]} : vector<32x128xf32> to vector<32x30xf32>
    %53 = arith.truncf %52 : vector<32x30xf32> to vector<32x30xbf16>
    %c0_36 = arith.constant 0 : index
    %c42 = arith.constant 42 : index
    %54 = vector.load %arg10[%c0_36, %c42] : memref<32x150xbf16, #tpu.memory_space<vmem>>, vector<32x30xbf16>
    tpu.vector_store %arg10[%c0_36, %c42], %53 {strides = array<i32>} : memref<32x150xbf16, #tpu.memory_space<vmem>>, vector<32x30xbf16>,
    %55 = vector.extract_strided_slice %38 {offsets = [0, 64], sizes = [32, 30], strides = [1, 1]} : vector<32x128xf32> to vector<32x30xf32>
    %56 = arith.truncf %55 : vector<32x30xf32> to vector<32x30xbf16>
    %c0_37 = arith.constant 0 : index
    %c78 = arith.constant 78 : index
    %57 = vector.load %arg10[%c0_37, %c78] : memref<32x150xbf16, #tpu.memory_space<vmem>>, vector<32x30xbf16>
    tpu.vector_store %arg10[%c0_37, %c78], %56 {strides = array<i32>} : memref<32x150xbf16, #tpu.memory_space<vmem>>, vector<32x30xbf16>,
    %58 = vector.extract_strided_slice %38 {offsets = [0, 96], sizes = [32, 30], strides = [1, 1]} : vector<32x128xf32> to vector<32x30xf32>
    %59 = arith.truncf %58 : vector<32x30xf32> to vector<32x30xbf16>
    %c0_38 = arith.constant 0 : index
    %c114 = arith.constant 114 : index
    %60 = vector.load %arg10[%c0_38, %c114] : memref<32x150xbf16, #tpu.memory_space<vmem>>, vector<32x30xbf16>
    tpu.vector_store %arg10[%c0_38, %c114], %59 {strides = array<i32>} : memref<32x150xbf16, #tpu.memory_space<vmem>>, vector<32x30xbf16>,
    %c0_39 = arith.constant 0 : index
    %c0_40 = arith.constant 0 : index
    %61 = vector.load %arg10[%c0_39, %c0_40] : memref<32x150xbf16, #tpu.memory_space<vmem>>, vector<32x144xbf16>
    %c0_41 = arith.constant 0 : index
    %c0_42 = arith.constant 0 : index
    %c0_43 = arith.constant 0 : index
    %62 = vector.load %arg4[%c0_41, %c0_42, %c0_43] : memref<3x64x32xbf16, #tpu.memory_space<vmem>>, vector<1x64x32xbf16>
    %63 = vector.shape_cast %62 : vector<1x64x32xbf16> to vector<64x32xbf16>
    %cst_44 = arith.constant dense<0.000000e+00> : vector<64x144xf32>
    %64 = tpu.matmul %63, %61, %cst_44 {dimension_numbers = #tpu.dot_dimension_numbers<[1], [0], [0], [1], [0, 0, 1, 1], [], []>} : vector<64x32xbf16>, vector<32x144xbf16>, vector<64x144xf32> -> vector<64x144xf32>
    %c0_45 = arith.constant 0 : index
    %c3 = arith.constant 3 : index
    %65 = vector.load %arg10[%c0_45, %c3] : memref<32x150xbf16, #tpu.memory_space<vmem>>, vector<32x144xbf16>
    %c1_46 = arith.constant 1 : index
    %c0_47 = arith.constant 0 : index
    %c0_48 = arith.constant 0 : index
    %66 = vector.load %arg4[%c1_46, %c0_47, %c0_48] : memref<3x64x32xbf16, #tpu.memory_space<vmem>>, vector<1x64x32xbf16>
    %67 = vector.shape_cast %66 : vector<1x64x32xbf16> to vector<64x32xbf16>
    %cst_49 = arith.constant dense<0.000000e+00> : vector<64x144xf32>
    %68 = tpu.matmul %67, %65, %cst_49 {dimension_numbers = #tpu.dot_dimension_numbers<[1], [0], [0], [1], [0, 0, 1, 1], [], []>} : vector<64x32xbf16>, vector<32x144xbf16>, vector<64x144xf32> -> vector<64x144xf32>
    %69 = arith.addf %64, %68 : vector<64x144xf32>
    %c0_50 = arith.constant 0 : index
    %c6_51 = arith.constant 6 : index
    %70 = vector.load %arg10[%c0_50, %c6_51] : memref<32x150xbf16, #tpu.memory_space<vmem>>, vector<32x144xbf16>
    %c2_52 = arith.constant 2 : index
    %c0_53 = arith.constant 0 : index
    %c0_54 = arith.constant 0 : index
    %71 = vector.load %arg4[%c2_52, %c0_53, %c0_54] : memref<3x64x32xbf16, #tpu.memory_space<vmem>>, vector<1x64x32xbf16>
    %72 = vector.shape_cast %71 : vector<1x64x32xbf16> to vector<64x32xbf16>
    %cst_55 = arith.constant dense<0.000000e+00> : vector<64x144xf32>
    %73 = tpu.matmul %72, %70, %cst_55 {dimension_numbers = #tpu.dot_dimension_numbers<[1], [0], [0], [1], [0, 0, 1, 1], [], []>} : vector<64x32xbf16>, vector<32x144xbf16>, vector<64x144xf32> -> vector<64x144xf32>
    %74 = arith.addf %69, %73 : vector<64x144xf32>
    %cst_56 = arith.constant dense<0.000000e+00> : vector<64xf32>
    %75 = vector.multi_reduction <add>, %74, %cst_56 [1] : vector<64x144xf32> to vector<64xf32>
    %76 = vector.shape_cast %75 : vector<64xf32> to vector<64x1xf32>
    %77 = arith.mulf %74, %74 : vector<64x144xf32>
    %cst_57 = arith.constant dense<0.000000e+00> : vector<64xf32>
    %78 = vector.multi_reduction <add>, %77, %cst_57 [1] : vector<64x144xf32> to vector<64xf32>
    %79 = vector.shape_cast %78 : vector<64xf32> to vector<64x1xf32>
    %cst_58 = arith.constant 0.0069444445 : f32
    %80 = vector.broadcast %cst_58 : f32 to vector<64x1xf32>
    %81 = arith.mulf %76, %80 : vector<64x1xf32>
    %cst_59 = arith.constant 0.0069444445 : f32
    %82 = vector.broadcast %cst_59 : f32 to vector<64x1xf32>
    %83 = arith.mulf %79, %82 : vector<64x1xf32>
    %84 = arith.mulf %81, %81 : vector<64x1xf32>
    %85 = arith.subf %83, %84 : vector<64x1xf32>
    %cst_60 = arith.constant 9.99999974E-6 : f32
    %86 = vector.broadcast %cst_60 : f32 to vector<64x1xf32>
    %87 = arith.addf %85, %86 : vector<64x1xf32>
    %88 = math.rsqrt %87 : vector<64x1xf32>
    %c0_61 = arith.constant 0 : index
    %c0_62 = arith.constant 0 : index
    %89 = vector.load %arg5[%c0_61, %c0_62] : memref<64x1xf32, #tpu.memory_space<vmem>>, vector<64x1xf32>
    %90 = arith.mulf %89, %88 : vector<64x1xf32>
    %c0_63 = arith.constant 0 : index
    %c0_64 = arith.constant 0 : index
    %91 = vector.load %arg6[%c0_63, %c0_64] : memref<64x1xf32, #tpu.memory_space<vmem>>, vector<64x1xf32>
    %92 = arith.mulf %81, %90 : vector<64x1xf32>
    %93 = arith.subf %91, %92 : vector<64x1xf32>
    %94 = vector.broadcast %90 : vector<64x1xf32> to vector<64x144xf32>
    %95 = arith.mulf %74, %94 : vector<64x144xf32>
    %96 = vector.broadcast %93 : vector<64x1xf32> to vector<64x144xf32>
    %97 = arith.addf %95, %96 : vector<64x144xf32>
    %cst_65 = arith.constant 0.000000e+00 : f32
    %98 = vector.broadcast %cst_65 : f32 to vector<64x144xf32>
    %99 = arith.maximumf %97, %98 : vector<64x144xf32>
    %c0_66 = arith.constant 0 : index
    %c0_67 = arith.constant 0 : index
    %100 = vector.load %arg7[%c0_66, %c0_67] : memref<64x144xf32, #tpu.memory_space<vmem>>, vector<64x144xf32>
    %101 = arith.mulf %99, %100 : vector<64x144xf32>
    %cst_68 = arith.constant dense<0.000000e+00> : vector<144xf32>
    %102 = vector.multi_reduction <add>, %101, %cst_68 [0] : vector<64x144xf32> to vector<144xf32>
    %103 = vector.shape_cast %102 : vector<144xf32> to vector<1x144xf32>
    %c0_69 = arith.constant 0 : index
    %c0_70 = arith.constant 0 : index
    %104 = vector.load %arg8[%c0_69, %c0_70] : memref<1x144xf32, #tpu.memory_space<vmem>>, vector<1x144xf32>
    %105 = arith.addf %103, %104 : vector<1x144xf32>
    %106 = math.tanh %105 : vector<1x144xf32>
    %107 = vector.broadcast %106 : vector<1x144xf32> to vector<64x144xf32>
    %108 = arith.mulf %99, %107 : vector<64x144xf32>
    %109 = vector.extract_strided_slice %108 {offsets = [0, 0], sizes = [64, 30], strides = [1, 1]} : vector<64x144xf32> to vector<64x30xf32>
    %cst_71 = arith.constant dense<0.000000e+00> : vector<64xf32>
    %110 = vector.multi_reduction <add>, %109, %cst_71 [1] : vector<64x30xf32> to vector<64xf32>
    %c0_72 = arith.constant 0 : index
    %c0_73 = arith.constant 0 : index
    %111 = vector.load %arg9[%c0_72, %c0_73] : memref<4x64xf32, #tpu.memory_space<vmem>>, vector<1x64xf32>
    %112 = vector.shape_cast %111 : vector<1x64xf32> to vector<64xf32>
    %113 = vector.shape_cast %110 : vector<64xf32> to vector<1x64xf32>
    tpu.vector_store %arg9[%c0_72, %c0_73], %113 {strides = array<i32>} : memref<4x64xf32, #tpu.memory_space<vmem>>, vector<1x64xf32>,
    %114 = vector.extract_strided_slice %108 {offsets = [0, 36], sizes = [64, 30], strides = [1, 1]} : vector<64x144xf32> to vector<64x30xf32>
    %cst_74 = arith.constant dense<0.000000e+00> : vector<64xf32>
    %115 = vector.multi_reduction <add>, %114, %cst_74 [1] : vector<64x30xf32> to vector<64xf32>
    %c1_75 = arith.constant 1 : index
    %c0_76 = arith.constant 0 : index
    %116 = vector.load %arg9[%c1_75, %c0_76] : memref<4x64xf32, #tpu.memory_space<vmem>>, vector<1x64xf32>
    %117 = vector.shape_cast %116 : vector<1x64xf32> to vector<64xf32>
    %118 = vector.shape_cast %115 : vector<64xf32> to vector<1x64xf32>
    tpu.vector_store %arg9[%c1_75, %c0_76], %118 {strides = array<i32>} : memref<4x64xf32, #tpu.memory_space<vmem>>, vector<1x64xf32>,
    %119 = vector.extract_strided_slice %108 {offsets = [0, 72], sizes = [64, 30], strides = [1, 1]} : vector<64x144xf32> to vector<64x30xf32>
    %cst_77 = arith.constant dense<0.000000e+00> : vector<64xf32>
    %120 = vector.multi_reduction <add>, %119, %cst_77 [1] : vector<64x30xf32> to vector<64xf32>
    %c2_78 = arith.constant 2 : index
    %c0_79 = arith.constant 0 : index
    %121 = vector.load %arg9[%c2_78, %c0_79] : memref<4x64xf32, #tpu.memory_space<vmem>>, vector<1x64xf32>
    %122 = vector.shape_cast %121 : vector<1x64xf32> to vector<64xf32>
    %123 = vector.shape_cast %120 : vector<64xf32> to vector<1x64xf32>
    tpu.vector_store %arg9[%c2_78, %c0_79], %123 {strides = array<i32>} : memref<4x64xf32, #tpu.memory_space<vmem>>, vector<1x64xf32>,
    %124 = vector.extract_strided_slice %108 {offsets = [0, 108], sizes = [64, 30], strides = [1, 1]} : vector<64x144xf32> to vector<64x30xf32>
    %cst_80 = arith.constant dense<0.000000e+00> : vector<64xf32>
    %125 = vector.multi_reduction <add>, %124, %cst_80 [1] : vector<64x30xf32> to vector<64xf32>
    %c3_81 = arith.constant 3 : index
    %c0_82 = arith.constant 0 : index
    %126 = vector.load %arg9[%c3_81, %c0_82] : memref<4x64xf32, #tpu.memory_space<vmem>>, vector<1x64xf32>
    %127 = vector.shape_cast %126 : vector<1x64xf32> to vector<64xf32>
    %128 = vector.shape_cast %125 : vector<64xf32> to vector<1x64xf32>
    tpu.vector_store %arg9[%c3_81, %c0_82], %128 {strides = array<i32>} : memref<4x64xf32, #tpu.memory_space<vmem>>, vector<1x64xf32>,
    return
  }
}

</mosaic_0001>

<llo_original>
// kernel: tile.14
$region0: #{tile.14}
  %s0 = inlined_call_operand.vmem [shape: f32[64,4,36], index: 0, kind: input, shape index: {}]
  %s1 = inlined_call_operand.vmem [shape: f32[64,144], index: 1, kind: output, shape index: {}]
  %v2 = vld [vmem:[%s0] sm:$0xff]
  %vm3 = vcmask 523264
  %4 = vst.msk [vmem:[%s1] sm:$0xff] %vm3, %v2
  %s5 = scalar_lea.vmem %s0, 8
  %v6 = vld [vmem:[%s5] sm:$0xff]
  %vm7 = vcmask 523264
  %s8 = scalar_lea.vmem %s1, 8
  %9 = vst.msk [vmem:[%s8] sm:$0xff] %vm7, %v6
  %s10 = scalar_lea.vmem %s0, 16
  %v11 = vld [vmem:[%s10] sm:$0xff]
  %vm12 = vcmask 523264
  %s13 = scalar_lea.vmem %s1, 16
  %14 = vst.msk [vmem:[%s13] sm:$0xff] %vm12, %v11
  %s15 = scalar_lea.vmem %s0, 24
  %v16 = vld [vmem:[%s15] sm:$0xff]
  %vm17 = vcmask 523264
  %s18 = scalar_lea.vmem %s1, 24
  %19 = vst.msk [vmem:[%s18] sm:$0xff] %vm17, %v16
  %s20 = scalar_lea.vmem %s0, 32
  %v21 = vld [vmem:[%s20] sm:$0xf]
  %vm22 = vcmask 523264
  %s23 = scalar_lea.vmem %s1, 32
  %24 = vst.msk [vmem:[%s23] sm:$0xf] %vm22, %v21
  %s25 = scalar_lea.vmem %s0, 40
  %v26 = vld [vmem:[%s25] sm:$0xff]
  %vm27 = vcmask 523264
  %s28 = scalar_lea.vmem %s1, 36
  %29 = vst.msk [vmem:[%s28] sm:$0xff] %vm27, %v26
  %s30 = scalar_lea.vmem %s0, 48
  %v31 = vld [vmem:[%s30] sm:$0xff]
  %vm32 = vcmask 523264
  %s33 = scalar_lea.vmem %s1, 44
  %34 = vst.msk [vmem:[%s33] sm:$0xff] %vm32, %v31
  %s35 = scalar_lea.vmem %s0, 56
  %v36 = vld [vmem:[%s35] sm:$0xff]
  %vm37 = vcmask 523264
  %s38 = scalar_lea.vmem %s1, 52
  %39 = vst.msk [vmem:[%s38] sm:$0xff] %vm37, %v36
  %s40 = scalar_lea.vmem %s0, 64
  %v41 = vld [vmem:[%s40] sm:$0xff]
  %vm42 = vcmask 523264
  %s43 = scalar_lea.vmem %s1, 60
  %44 = vst.msk [vmem:[%s43] sm:$0xff] %vm42, %v41
  %s45 = scalar_lea.vmem %s0, 72
  %v46 = vld [vmem:[%s45] sm:$0xf]
  %vm47 = vcmask 523264
  %s48 = scalar_lea.vmem %s1, 68
  %49 = vst.msk [vmem:[%s48] sm:$0xf] %vm47, %v46
  %s50 = scalar_lea.vmem %s0, 80
  %v51 = vld [vmem:[%s50] sm:$0xff]
  %vm52 = vcmask 523264
  %s53 = scalar_lea.vmem %s1, 72
  %54 = vst.msk [vmem:[%s53] sm:$0xff] %vm52, %v51
  %s55 = scalar_lea.vmem %s0, 88
  %v56 = vld [vmem:[%s55] sm:$0xff]
  %vm57 = vcmask 523264
  %s58 = scalar_lea.vmem %s1, 80
  %59 = vst.msk [vmem:[%s58] sm:$0xff] %vm57, %v56
  %s60 = scalar_lea.vmem %s0, 96
  %v61 = vld [vmem:[%s60] sm:$0xff]
  %vm62 = vcmask 523264
  %s63 = scalar_lea.vmem %s1, 88
  %64 = vst.msk [vmem:[%s63] sm:$0xff] %vm62, %v61
  %s65 = scalar_lea.vmem %s0, 104
  %v66 = vld [vmem:[%s65] sm:$0xff]
  %vm67 = vcmask 523264
  %s68 = scalar_lea.vmem %s1, 96
  %69 = vst.msk [vmem:[%s68] sm:$0xff] %vm67, %v66
  %s70 = scalar_lea.vmem %s0, 112
  %v71 = vld [vmem:[%s70] sm:$0xf]
  %vm72 = vcmask 523264
  %s73 = scalar_lea.vmem %s1, 104
  %74 = vst.msk [vmem:[%s73] sm:$0xf] %vm72, %v71
  %s75 = scalar_lea.vmem %s0, 120
  %v76 = vld [vmem:[%s75] sm:$0xff]
  %vm77 = vcmask 523264
  %s78 = scalar_lea.vmem %s1, 108
  %79 = vst.msk [vmem:[%s78] sm:$0xff] %vm77, %v76
  %s80 = scalar_lea.vmem %s0, 128
  %v81 = vld [vmem:[%s80] sm:$0xff]
  %vm82 = vcmask 523264
  %s83 = scalar_lea.vmem %s1, 116
  %84 = vst.msk [vmem:[%s83] sm:$0xff] %vm82, %v81
  %s85 = scalar_lea.vmem %s0, 136
  %v86 = vld [vmem:[%s85] sm:$0xff]
  %vm87 = vcmask 523264
  %s88 = scalar_lea.vmem %s1, 124
  %89 = vst.msk [vmem:[%s88] sm:$0xff] %vm87, %v86
  %s90 = scalar_lea.vmem %s0, 144
  %v91 = vld [vmem:[%s90] sm:$0xff]
  %vm92 = vcmask 523264
  %s93 = scalar_lea.vmem %s1, 132
  %94 = vst.msk [vmem:[%s93] sm:$0xff] %vm92, %v91
  %s95 = scalar_lea.vmem %s0, 152
  %v96 = vld [vmem:[%s95] sm:$0xf]
  %vm97 = vcmask 523264
  %s98 = scalar_lea.vmem %s1, 140
  %99 = vst.msk [vmem:[%s98] sm:$0xf] %vm97, %v96

// kernel: memory_model_forward.1
$region0: #{memory_model_forward.1}
  #allocation0 [shape = 'u32[]', space=smem, size = 0x4, offset = 0x4, fixed_abs, tag = 'smem constant byte address 0x4 - core index']
  #allocation1 [shape = 'u32[72,128]{1,0:T(1,128)}', space=vmem, size = 0x9000, scoped, tag = 'internal scratch']
  #allocation2 [shape = 'bf16[32,150]{1,0:T(8,128)(2,1)}', space=vmem, size = 0x4000, scoped, tag = 'scratch operand']
  %s0 = inlined_call_operand.vmem [shape: bf16[20,130], index: 0, kind: input, shape index: {}]
  %s1 = inlined_call_operand.vmem [shape: bf16[3,32,20], index: 1, kind: input, shape index: {}]
  %s2 = inlined_call_operand.vmem [shape: f32[32,1], index: 2, kind: input, shape index: {}]
  %s3 = inlined_call_operand.vmem [shape: f32[32,1], index: 3, kind: input, shape index: {}]
  %s4 = inlined_call_operand.vmem [shape: bf16[3,64,32], index: 4, kind: input, shape index: {}]
  %s5 = inlined_call_operand.vmem [shape: f32[64,1], index: 5, kind: input, shape index: {}]
  %s6 = inlined_call_operand.vmem [shape: f32[64,1], index: 6, kind: input, shape index: {}]
  %s7 = inlined_call_operand.vmem [shape: f32[64,144], index: 7, kind: input, shape index: {}]
  %s8 = inlined_call_operand.vmem [shape: f32[1,144], index: 8, kind: input, shape index: {}]
  %s9 = inlined_call_operand.hbm [shape: f32[4,64], index: 9, kind: output, shape index: {}]
  %s10 = sld [smem:[#allocation0]]
  $region46: #{memory_model_forward.1} parent=0
    _
  %s12 = ssub.s32 1, %s10
  %s13 = scalar_select 0, %s12, %s10
  $region1: #{memory_model_forward.1} parent=0
    #allocation3 [shape = 'u8[2048]{0}', space=vmem, size = 0x800, scoped, tag = 'output window, operand 0, single buffered']
    #allocation4 [shape = 's32[1]{0}', space=sflag, size = 0x4, scoped, tag = 'scoped memory for memory_model_forward.1']
    %14 = vsyncpa [#allocation4], 0
    // Predicated region
    $region2: #{memory_model_forward.1} parent=1 // pred_check
      _
    $region3: #{memory_model_forward.1} parent=1 // pred_check_branch
      %16 = sbr.rel (0) target = $region5
    $region4: #{memory_model_forward.1} parent=1 // pred_region
      _
    $region5: #{memory_model_forward.1} parent=1 // pred_fallthru
      _
    // Predicated region
    $region6: #{memory_model_forward.1} parent=1 // pred_check
      _
    $region7: #{memory_model_forward.1} parent=1 // pred_check_branch
      %18 = sbr.rel (0) target = $region9
    $region8: #{memory_model_forward.1} parent=1 // pred_region
      _
    $region9: #{memory_model_forward.1} parent=1 // pred_fallthru
      _
    // Predicated region
    $region10: #{memory_model_forward.1} parent=1 // pred_check
      _
    $region11: #{memory_model_forward.1} parent=1 // pred_check_branch
      %20 = sbr.rel (0) target = $region13
    $region12: #{memory_model_forward.1} parent=1 // pred_region
      _
    $region13: #{memory_model_forward.1} parent=1 // pred_fallthru
      _
    // Predicated region
    $region14: #{memory_model_forward.1} parent=1 // pred_check
      _
    $region15: #{memory_model_forward.1} parent=1 // pred_check_branch
      %22 = sbr.rel (0) target = $region17
    $region16: #{memory_model_forward.1} parent=1 // pred_region
      _
    $region17: #{memory_model_forward.1} parent=1 // pred_fallthru
      _
    // Predicated region
    $region18: #{memory_model_forward.1} parent=1 // pred_check
      _
    $region19: #{memory_model_forward.1} parent=1 // pred_check_branch
      %24 = sbr.rel (0) target = $region21
    $region20: #{memory_model_forward.1} parent=1 // pred_region
      _
    $region21: #{memory_model_forward.1} parent=1 // pred_fallthru
      _
    // Predicated region
    $region22: #{memory_model_forward.1} parent=1 // pred_check
      _
    $region23: #{memory_model_forward.1} parent=1 // pred_check_branch
      %26 = sbr.rel (0) target = $region25
    $region24: #{memory_model_forward.1} parent=1 // pred_region
      _
    $region25: #{memory_model_forward.1} parent=1 // pred_fallthru
      _
    // Predicated region
    $region26: #{memory_model_forward.1} parent=1 // pred_check
      _
    $region27: #{memory_model_forward.1} parent=1 // pred_check_branch
      %28 = sbr.rel (0) target = $region29
    $region28: #{memory_model_forward.1} parent=1 // pred_region
      _
    $region29: #{memory_model_forward.1} parent=1 // pred_fallthru
      _
    // Predicated region
    $region30: #{memory_model_forward.1} parent=1 // pred_check
      _
    $region31: #{memory_model_forward.1} parent=1 // pred_check_branch
      %30 = sbr.rel (0) target = $region33
    $region32: #{memory_model_forward.1} parent=1 // pred_region
      _
    $region33: #{memory_model_forward.1} parent=1 // pred_fallthru
      _
    // Predicated region
    $region34: #{memory_model_forward.1} parent=1 // pred_check
      _
    $region35: #{memory_model_forward.1} parent=1 // pred_check_branch
      %32 = sbr.rel (0) target = $region37
    $region36: #{memory_model_forward.1} parent=1 // pred_region
      _
    $region37: #{memory_model_forward.1} parent=1 // pred_fallthru
      _
    %v34 = vld [vmem:[%s0] sm:$0xf]
    %v35 = vld [vmem:[%s0 + $0x8] sm:$0xf]
    %v36 = vld [vmem:[%s0 + $0x10] sm:$0x3]
    %v37 = vld [vmem:[%s1] sm:$0xf]
    %v38 = vld [vmem:[%s1 + $0x4] sm:$0xf]
    %v39 = vld [vmem:[%s1 + $0x8] sm:$0xf]
    %v40 = vld [vmem:[%s1 + $0xc] sm:$0xf]
    %v41 = vld [vmem:[%s0] sm:$0xff]
    %v42 = vld [vmem:[%s0 + $0x8] sm:$0xff]
    %v43 = vld [vmem:[%s0 + $0x10] sm:$0x33]
    %s44 = scalar_lea.vmem %s1, 16
    %v45 = vld [vmem:[%s44] sm:$0xf]
    %v46 = vld [vmem:[%s44 + $0x4] sm:$0xf]
    %v47 = vld [vmem:[%s44 + $0x8] sm:$0xf]
    %v48 = vld [vmem:[%s44 + $0xc] sm:$0xf]
    %v53 = vunpack.c.l.b16 %v45
    %v54 = vunpack.c.l.b16 %v46
    %v55 = vunpack.c.l.b16 %v47
    %v56 = vunpack.c.l.b16 %v48
    %v57 = vpack.c.b16 %v54, %v53
    %v58 = vpack.c.b16 %v56, %v55
    %v62 = vunpack.c.l.b16 %v41
    %v63 = vunpack.c.h.b16 %v41
    %v64 = vunpack.c.l.b16 %v42
    %v65 = vunpack.c.h.b16 %v42
    %v66 = vunpack.c.l.b16 %v43
    %v67 = vunpack.c.h.b16 %v43
    %v68 = vpack.c.b16 %v64, %v62
    %v69 = vpack.c.b16 %v65, %v63
    %v70 = vpack.c.b16 %v66, %v66
    %v71 = vpack.c.b16 %v67, %v67
    %72 = vrot.lane.b32.xlu0 %v68, 127
    %v73 = vpop.permute.xlu0 %72
    %74 = vrot.lane.b32.xlu0 %v69, 127
    %v75 = vpop.permute.xlu0 %74
    %76 = vrot.lane.b32.xlu0 %v70, 127
    %v77 = vpop.permute.xlu0 %76
    %78 = vrot.lane.b32.xlu0 %v71, 127
    %v79 = vpop.permute.xlu0 %78
    %vm80 = vcmask 1039360
    %v81 = vsel %vm80, %v73, %v75
    %v82 = vsel %vm80, %v77, %v79
    %vm84 = vcmask 162816
    %v86 = vsel %vm84, %v57, 0
    %v89 = vsel %vm84, %v58, 0
    %vm91 = vcmask 1041408
    %v93 = vsel %vm91, %v82, 0
    %95 = vmatpush.bf16.msra.mxu0 0
    %96 = vmatpush.bf16.msra.mxu0 0
    %97 = vmatpush.bf16.msra.mxu0 0
    %98 = vmatpush.bf16.msra.mxu0 0
    %99 = vmatpush.bf16.msra.mxu0 0
    %100 = vmatpush.bf16.msra.mxu0 0
    %101 = vmatpush.bf16.msra.mxu0 %v93
    %102 = vmatpush.bf16.msra.mxu0 %v81
    %103 = vmatmul.bf16.gmra.mxu0 %v86
    %v104 = vpop.f32.mrf.mxu0
    %v105 = vadd.f32 0.0, %v104
    %v106 = vpop.f32.mrf.mxu0
    %v107 = vadd.f32 0.0, %v106
    %108 = vmatmul.bf16.gmra.mxu0 %v89
    %v109 = vpop.f32.mrf.mxu0
    %v110 = vadd.f32 0.0, %v109
    %v111 = vpop.f32.mrf.mxu0
    %v112 = vadd.f32 0.0, %v111
    %113 = vdwg.mxu0
    %v118 = vunpack.c.l.b16 %v37
    %v119 = vunpack.c.l.b16 %v38
    %v120 = vunpack.c.l.b16 %v39
    %v121 = vunpack.c.l.b16 %v40
    %v122 = vpack.c.b16 %v119, %v118
    %v123 = vpack.c.b16 %v121, %v120
    %v127 = vunpack.c.l.b16 %v34
    %v128 = vunpack.c.l.b16 %v35
    %v129 = vunpack.c.l.b16 %v36
    %v130 = vpack.c.b16 %v128, %v127
    %v131 = vpack.c.b16 %v129, %v129
    %v134 = vsel %vm84, %v122, 0
    %v137 = vsel %vm84, %v123, 0
    %v140 = vsel %vm91, %v131, 0
    %142 = vmatpush.bf16.msra.mxu0 0
    %143 = vmatpush.bf16.msra.mxu0 0
    %144 = vmatpush.bf16.msra.mxu0 0
    %145 = vmatpush.bf16.msra.mxu0 0
    %146 = vmatpush.bf16.msra.mxu0 0
    %147 = vmatpush.bf16.msra.mxu0 0
    %148 = vmatpush.bf16.msra.mxu0 %v140
    %149 = vmatpush.bf16.msra.mxu0 %v130
    %150 = vmatmul.bf16.gmra.mxu0 %v134
    %v151 = vpop.f32.mrf.mxu0
    %v152 = vadd.f32 %v105, %v151
    %v153 = vpop.f32.mrf.mxu0
    %v154 = vadd.f32 %v107, %v153
    %155 = vmatmul.bf16.gmra.mxu0 %v137
    %v156 = vpop.f32.mrf.mxu0
    %v157 = vadd.f32 %v110, %v156
    %v158 = vpop.f32.mrf.mxu0
    %v159 = vadd.f32 %v112, %v158
    %160 = vdwg.mxu0
    %s161 = scalar_lea.vmem %s1, 32
    %v162 = vld [vmem:[%s161] sm:$0xf]
    %v163 = vld [vmem:[%s161 + $0x4] sm:$0xf]
    %v164 = vld [vmem:[%s161 + $0x8] sm:$0xf]
    %v165 = vld [vmem:[%s161 + $0xc] sm:$0xf]
    %v170 = vunpack.c.l.b16 %v162
    %v171 = vunpack.c.l.b16 %v163
    %v172 = vunpack.c.l.b16 %v164
    %v173 = vunpack.c.l.b16 %v165
    %v174 = vpack.c.b16 %v171, %v170
    %v175 = vpack.c.b16 %v173, %v172
    %176 = vrot.lane.b32.xlu0 %v68, 126
    %v177 = vpop.permute.xlu0 %176
    %178 = vrot.lane.b32.xlu0 %v69, 126
    %v179 = vpop.permute.xlu0 %178
    %180 = vrot.lane.b32.xlu0 %v70, 126
    %v181 = vpop.permute.xlu0 %180
    %182 = vrot.lane.b32.xlu0 %v71, 126
    %v183 = vpop.permute.xlu0 %182
    %vm184 = vcmask 1031168
    %v185 = vsel %vm184, %v177, %v179
    %v186 = vsel %vm184, %v181, %v183
    %v189 = vsel %vm84, %v174, 0
    %v192 = vsel %vm84, %v175, 0
    %v195 = vsel %vm91, %v186, 0
    %197 = vmatpush.bf16.msra.mxu0 0
    %198 = vmatpush.bf16.msra.mxu0 0
    %199 = vmatpush.bf16.msra.mxu0 0
    %200 = vmatpush.bf16.msra.mxu0 0
    %201 = vmatpush.bf16.msra.mxu0 0
    %202 = vmatpush.bf16.msra.mxu0 0
    %203 = vmatpush.bf16.msra.mxu0 %v195
    %204 = vmatpush.bf16.msra.mxu0 %v185
    %205 = vmatmul.bf16.gmra.mxu0 %v189
    %v206 = vpop.f32.mrf.mxu0
    %v207 = vadd.f32 0.0, %v206
    %v208 = vpop.f32.mrf.mxu0
    %v209 = vadd.f32 0.0, %v208
    %210 = vmatmul.bf16.gmra.mxu0 %v192
    %v211 = vpop.f32.mrf.mxu0
    %v212 = vadd.f32 0.0, %v211
    %v213 = vpop.f32.mrf.mxu0
    %v214 = vadd.f32 0.0, %v213
    %215 = vdwg.mxu0
    %v216 = vadd.f32 %v152, %v207
    %v217 = vadd.f32 %v154, %v209
    %v218 = vadd.f32 %v157, %v212
    %v219 = vadd.f32 %v159, %v214
    %220 = vadd.xlane.f32.xlu0 %v216
    %v221 = vpop.xlane.xlu0 %220
    %222 = vadd.xlane.f32.xlu0 %v217
    %v223 = vpop.xlane.xlu0 %222
    %224 = vadd.xlane.f32.xlu0 %v218
    %v225 = vpop.xlane.xlu0 %224
    %226 = vadd.xlane.f32.xlu0 %v219
    %v227 = vpop.xlane.xlu0 %226
    %v228 = vmul.f32 %v216, %v216
    %v229 = vmul.f32 %v217, %v217
    %v230 = vmul.f32 %v218, %v218
    %v231 = vmul.f32 %v219, %v219
    %232 = vadd.xlane.f32.xlu0 %v228
    %v233 = vpop.xlane.xlu0 %232
    %234 = vadd.xlane.f32.xlu0 %v229
    %v235 = vpop.xlane.xlu0 %234
    %236 = vadd.xlane.f32.xlu0 %v230
    %v237 = vpop.xlane.xlu0 %236
    %238 = vadd.xlane.f32.xlu0 %v231
    %v239 = vpop.xlane.xlu0 %238
    %v240 = vmul.f32 %v221, 0.0078125
    %v241 = vmul.f32 %v223, 0.0078125
    %v242 = vmul.f32 %v225, 0.0078125
    %v243 = vmul.f32 %v227, 0.0078125
    %v244 = vmul.f32 %v233, 0.0078125
    %v245 = vmul.f32 %v235, 0.0078125
    %v246 = vmul.f32 %v237, 0.0078125
    %v247 = vmul.f32 %v239, 0.0078125
    %v248 = vmul.f32 %v240, %v240
    %v249 = vmul.f32 %v241, %v241
    %v250 = vmul.f32 %v242, %v242
    %v251 = vmul.f32 %v243, %v243
    %v252 = vsub.f32 %v244, %v248
    %v253 = vsub.f32 %v245, %v249
    %v254 = vsub.f32 %v246, %v250
    %v255 = vsub.f32 %v247, %v251
    %v256 = vadd.f32 %v252, 1e-05
    %v257 = vadd.f32 %v253, 1e-05
    %v258 = vadd.f32 %v254, 1e-05
    %v259 = vadd.f32 %v255, 1e-05
    %v260 = vrsqrt.pop %v256
    %v261 = vmul.f32 %v260, %v256
    %v262 = vmul.f32 %v261, %v260
    %v263 = vmul.f32 0.5, %v262
    %v264 = vsub.f32 1.5, %v263
    %v265 = vmul.f32 %v260, %v264
    %vm266 = vweird.f32 %v256
    %vm267 = vweird.f32 %v260
    %vm268 = vmor %vm266, %vm267
    %v269 = vsel %vm268, %v260, %v265
    %v270 = vrsqrt.pop %v257
    %v271 = vmul.f32 %v270, %v257
    %v272 = vmul.f32 %v271, %v270
    %v273 = vmul.f32 0.5, %v272
    %v274 = vsub.f32 1.5, %v273
    %v275 = vmul.f32 %v270, %v274
    %vm276 = vweird.f32 %v257
    %vm277 = vweird.f32 %v270
    %vm278 = vmor %vm276, %vm277
    %v279 = vsel %vm278, %v270, %v275
    %v280 = vrsqrt.pop %v258
    %v281 = vmul.f32 %v280, %v258
    %v282 = vmul.f32 %v281, %v280
    %v283 = vmul.f32 0.5, %v282
    %v284 = vsub.f32 1.5, %v283
    %v285 = vmul.f32 %v280, %v284
    %vm286 = vweird.f32 %v258
    %vm287 = vweird.f32 %v280
    %vm288 = vmor %vm286, %vm287
    %v289 = vsel %vm288, %v280, %v285
    %v290 = vrsqrt.pop %v259
    %v291 = vmul.f32 %v290, %v259
    %v292 = vmul.f32 %v291, %v290
    %v293 = vmul.f32 0.5, %v292
    %v294 = vsub.f32 1.5, %v293
    %v295 = vmul.f32 %v290, %v294
    %vm296 = vweird.f32 %v259
    %vm297 = vweird.f32 %v290
    %vm298 = vmor %vm296, %vm297
    %v299 = vsel %vm298, %v290, %v295
    %v300 = vld [vmem:[%s2] sm:$0xff]
    %v301 = vld [vmem:[%s2 + $0x8] sm:$0xff]
    %v302 = vld [vmem:[%s2 + $0x10] sm:$0xff]
    %v303 = vld [vmem:[%s2 + $0x18] sm:$0xff]
    %v304 = vmul.f32 %v300, %v269
    %v305 = vmul.f32 %v301, %v279
    %v306 = vmul.f32 %v302, %v289
    %v307 = vmul.f32 %v303, %v299
    %v308 = vld [vmem:[%s3] sm:$0xff]
    %v309 = vld [vmem:[%s3 + $0x8] sm:$0xff]
    %v310 = vld [vmem:[%s3 + $0x10] sm:$0xff]
    %v311 = vld [vmem:[%s3 + $0x18] sm:$0xff]
    %v312 = vmul.f32 %v240, %v304
    %v313 = vmul.f32 %v241, %v305
    %v314 = vmul.f32 %v242, %v306
    %v315 = vmul.f32 %v243, %v307
    %v316 = vsub.f32 %v308, %v312
    %v317 = vsub.f32 %v309, %v313
    %v318 = vsub.f32 %v310, %v314
    %v319 = vsub.f32 %v311, %v315
    %321 = vset.pattern.permute.xlu0 0
    %322 = vperm.xlu0 %321, %v304
    %v323 = vpop.permute.xlu0 %322
    %326 = vset.pattern.permute.xlu0 0
    %327 = vperm.xlu0 %326, %v305
    %v328 = vpop.permute.xlu0 %327
    %331 = vset.pattern.permute.xlu0 0
    %332 = vperm.xlu0 %331, %v306
    %v333 = vpop.permute.xlu0 %332
    %336 = vset.pattern.permute.xlu0 0
    %337 = vperm.xlu0 %336, %v307
    %v338 = vpop.permute.xlu0 %337
    %v340 = vmul.f32 %v216, %v323
    %v341 = vmul.f32 %v217, %v328
    %v342 = vmul.f32 %v218, %v333
    %v343 = vmul.f32 %v219, %v338
    %345 = vset.pattern.permute.xlu0 0
    %346 = vperm.xlu0 %345, %v316
    %v347 = vpop.permute.xlu0 %346
    %350 = vset.pattern.permute.xlu0 0
    %351 = vperm.xlu0 %350, %v317
    %v352 = vpop.permute.xlu0 %351
    %355 = vset.pattern.permute.xlu0 0
    %356 = vperm.xlu0 %355, %v318
    %v357 = vpop.permute.xlu0 %356
    %360 = vset.pattern.permute.xlu0 0
    %361 = vperm.xlu0 %360, %v319
    %v362 = vpop.permute.xlu0 %361
    %v364 = vadd.f32 %v340, %v347
    %v365 = vadd.f32 %v341, %v352
    %v366 = vadd.f32 %v342, %v357
    %v367 = vadd.f32 %v343, %v362
    %v368 = vmax.f32 %v364, 0.0
    %v369 = vmax.f32 %v365, 0.0
    %v370 = vmax.f32 %v366, 0.0
    %v371 = vmax.f32 %v367, 0.0
    %vm372 = vcmask 44032
    %373 = vst.msk [vmem:[#allocation2] sm:$0xf] %vm372, 0
    %374 = vst.msk [vmem:[#allocation2 + $0x8] sm:$0xf] %vm372, 0
    %375 = vst.msk [vmem:[#allocation2 + $0x10] sm:$0xf] %vm372, 0
    %376 = vst.msk [vmem:[#allocation2 + $0x18] sm:$0xf] %vm372, 0
    %vm377 = vcmask 339232
    %378 = vst.msk [vmem:[#allocation2] sm:$0xf] %vm377, 0
    %379 = vst.msk [vmem:[#allocation2 + $0x8] sm:$0xf] %vm377, 0
    %380 = vst.msk [vmem:[#allocation2 + $0x10] sm:$0xf] %vm377, 0
    %381 = vst.msk [vmem:[#allocation2 + $0x18] sm:$0xf] %vm377, 0
    %vm382 = vcmask 634432
    %383 = vst.msk [vmem:[#allocation2] sm:$0xf] %vm382, 0
    %384 = vst.msk [vmem:[#allocation2 + $0x8] sm:$0xf] %vm382, 0
    %385 = vst.msk [vmem:[#allocation2 + $0x10] sm:$0xf] %vm382, 0
    %386 = vst.msk [vmem:[#allocation2 + $0x18] sm:$0xf] %vm382, 0
    %vm387 = vcmask 929632
    %388 = vst.msk [vmem:[#allocation2] sm:$0xf] %vm387, 0
    %389 = vst.msk [vmem:[#allocation2 + $0x8] sm:$0xf] %vm387, 0
    %390 = vst.msk [vmem:[#allocation2 + $0x10] sm:$0xf] %vm387, 0
    %391 = vst.msk [vmem:[#allocation2 + $0x18] sm:$0xf] %vm387, 0
    %vm392 = vcmask 175232
    %393 = vst.msk [vmem:[#allocation2 + $0x4] sm:$0xf] %vm392, 0
    %394 = vst.msk [vmem:[#allocation2 + $0xc] sm:$0xf] %vm392, 0
    %395 = vst.msk [vmem:[#allocation2 + $0x14] sm:$0xf] %vm392, 0
    %396 = vst.msk [vmem:[#allocation2 + $0x1c] sm:$0xf] %vm392, 0
    %v397 = vpack.c.bf16 %v368, %v368
    %v398 = vpack.c.bf16 %v369, %v369
    %v399 = vpack.c.bf16 %v370, %v370
    %v400 = vpack.c.bf16 %v371, %v371
    %405 = vrot.lane.b32.xlu0 %v397, 6
    %v406 = vpop.permute.xlu0 %405
    %407 = vrot.lane.b32.xlu0 %v398, 6
    %v408 = vpop.permute.xlu0 %407
    %409 = vrot.lane.b32.xlu0 %v399, 6
    %v410 = vpop.permute.xlu0 %409
    %411 = vrot.lane.b32.xlu0 %v400, 6
    %v412 = vpop.permute.xlu0 %411
    %vm417 = vcmask 289840
    %418 = vst.msk [vmem:[#allocation2] sm:$0xf] %vm417, %v406
    %419 = vst.msk [vmem:[#allocation2 + $0x8] sm:$0xf] %vm417, %v408
    %420 = vst.msk [vmem:[#allocation2 + $0x10] sm:$0xf] %vm417, %v410
    %421 = vst.msk [vmem:[#allocation2 + $0x18] sm:$0xf] %vm417, %v412
    %422 = vrot.lane.b32.xlu0 %v397, 10
    %v423 = vpop.permute.xlu0 %422
    %424 = vrot.lane.b32.xlu0 %v398, 10
    %v425 = vpop.permute.xlu0 %424
    %426 = vrot.lane.b32.xlu0 %v399, 10
    %v427 = vpop.permute.xlu0 %426
    %428 = vrot.lane.b32.xlu0 %v400, 10
    %v429 = vpop.permute.xlu0 %428
    %vm434 = vcmask 585040
    %435 = vst.msk [vmem:[#allocation2] sm:$0xf] %vm434, %v423
    %436 = vst.msk [vmem:[#allocation2 + $0x8] sm:$0xf] %vm434, %v425
    %437 = vst.msk [vmem:[#allocation2 + $0x10] sm:$0xf] %vm434, %v427
    %438 = vst.msk [vmem:[#allocation2 + $0x18] sm:$0xf] %vm434, %v429
    %439 = vrot.lane.b32.xlu0 %v397, 14
    %v440 = vpop.permute.xlu0 %439
    %441 = vrot.lane.b32.xlu0 %v398, 14
    %v442 = vpop.permute.xlu0 %441
    %443 = vrot.lane.b32.xlu0 %v399, 14
    %v444 = vpop.permute.xlu0 %443
    %445 = vrot.lane.b32.xlu0 %v400, 14
    %v446 = vpop.permute.xlu0 %445
    %vm451 = vcmask 880240
    %452 = vst.msk [vmem:[#allocation2] sm:$0xf] %vm451, %v440
    %453 = vst.msk [vmem:[#allocation2 + $0x8] sm:$0xf] %vm451, %v442
    %454 = vst.msk [vmem:[#allocation2 + $0x10] sm:$0xf] %vm451, %v444
    %455 = vst.msk [vmem:[#allocation2 + $0x18] sm:$0xf] %vm451, %v446
    %456 = vrot.lane.b32.xlu0 %v397, 18
    %v457 = vpop.permute.xlu0 %456
    %458 = vrot.lane.b32.xlu0 %v398, 18
    %v459 = vpop.permute.xlu0 %458
    %460 = vrot.lane.b32.xlu0 %v399, 18
    %v461 = vpop.permute.xlu0 %460
    %462 = vrot.lane.b32.xlu0 %v400, 18
    %v463 = vpop.permute.xlu0 %462
    %v464 = vrot.slane %v457, 4
    %v465 = vrot.slane %v459, 4
    %v466 = vrot.slane %v461, 4
    %v467 = vrot.slane %v463, 4
    %vm468 = vcmask 146432
    %v469 = vsel %vm468, %v464, %v457
    %v470 = vsel %vm468, %v465, %v459
    %v471 = vsel %vm468, %v466, %v461
    %v472 = vsel %vm468, %v467, %v463
    %vm477 = vcmask 1044368
    %vm478 = vcmask 130052
    %vm479 = vmor %vm478, %vm477
    %480 = vst.msk [vmem:[#allocation2] sm:$0xff] %vm479, %v469
    %481 = vst.msk [vmem:[#allocation2 + $0x8] sm:$0xff] %vm479, %v470
    %482 = vst.msk [vmem:[#allocation2 + $0x10] sm:$0xff] %vm479, %v471
    %483 = vst.msk [vmem:[#allocation2 + $0x18] sm:$0xff] %vm479, %v472
    %v484 = vld [vmem:[#allocation2] sm:$0xff]
    %v485 = vld [vmem:[#allocation2 + $0x8] sm:$0xff]
    %v486 = vld [vmem:[#allocation2 + $0x10] sm:$0xff]
    %v487 = vld [vmem:[#allocation2 + $0x18] sm:$0xff]
    %v488 = vld [vmem:[%s4] sm:$0xf]
    %v489 = vld [vmem:[%s4 + $0x4] sm:$0xf]
    %v490 = vld [vmem:[%s4 + $0x8] sm:$0xf]
    %v491 = vld [vmem:[%s4 + $0xc] sm:$0xf]
    %v492 = vld [vmem:[%s4 + $0x10] sm:$0xf]
    %v493 = vld [vmem:[%s4 + $0x14] sm:$0xf]
    %v494 = vld [vmem:[%s4 + $0x18] sm:$0xf]
    %v495 = vld [vmem:[%s4 + $0x1c] sm:$0xf]
    %s496 = scalar_lea.vmem %s4, 32
    %v497 = vld [vmem:[%s496] sm:$0xf]
    %v498 = vld [vmem:[%s496 + $0x4] sm:$0xf]
    %v499 = vld [vmem:[%s496 + $0x8] sm:$0xf]
    %v500 = vld [vmem:[%s496 + $0xc] sm:$0xf]
    %v501 = vld [vmem:[%s496 + $0x10] sm:$0xf]
    %v502 = vld [vmem:[%s496 + $0x14] sm:$0xf]
    %v503 = vld [vmem:[%s496 + $0x18] sm:$0xf]
    %v504 = vld [vmem:[%s496 + $0x1c] sm:$0xf]
    %v513 = vunpack.c.l.b16 %v497
    %v514 = vunpack.c.l.b16 %v498
    %v515 = vunpack.c.l.b16 %v499
    %v516 = vunpack.c.l.b16 %v500
    %v517 = vunpack.c.l.b16 %v501
    %v518 = vunpack.c.l.b16 %v502
    %v519 = vunpack.c.l.b16 %v503
    %v520 = vunpack.c.l.b16 %v504
    %v521 = vpack.c.b16 %v514, %v513
    %v522 = vpack.c.b16 %v516, %v515
    %v523 = vpack.c.b16 %v518, %v517
    %v524 = vpack.c.b16 %v520, %v519
    %v529 = vunpack.c.l.b16 %v484
    %v530 = vunpack.c.h.b16 %v484
    %v531 = vunpack.c.l.b16 %v485
    %v532 = vunpack.c.h.b16 %v485
    %v533 = vunpack.c.l.b16 %v486
    %v534 = vunpack.c.h.b16 %v486
    %v535 = vunpack.c.l.b16 %v487
    %v536 = vunpack.c.h.b16 %v487
    %v537 = vpack.c.b16 %v531, %v529
    %v538 = vpack.c.b16 %v532, %v530
    %v539 = vpack.c.b16 %v535, %v533
    %v540 = vpack.c.b16 %v536, %v534
    %541 = vrot.lane.b32.xlu0 %v537, 125
    %v542 = vpop.permute.xlu0 %541
    %543 = vrot.lane.b32.xlu0 %v538, 125
    %v544 = vpop.permute.xlu0 %543
    %545 = vrot.lane.b32.xlu0 %v539, 125
    %v546 = vpop.permute.xlu0 %545
    %547 = vrot.lane.b32.xlu0 %v540, 125
    %v548 = vpop.permute.xlu0 %547
    %vm549 = vcmask 1022976
    %v550 = vsel %vm549, %v542, %v544
    %v551 = vsel %vm549, %v546, %v548
    %vm556 = vcmask 261120
    %v558 = vsel %vm556, %v521, 0
    %v561 = vsel %vm556, %v522, 0
    %v564 = vsel %vm556, %v523, 0
    %v567 = vsel %vm556, %v524, 0
    %569 = vmatpush.bf16.msra.mxu0 0
    %570 = vmatpush.bf16.msra.mxu0 0
    %571 = vmatpush.bf16.msra.mxu0 0
    %572 = vmatpush.bf16.msra.mxu0 0
    %573 = vmatpush.bf16.msra.mxu0 0
    %574 = vmatpush.bf16.msra.mxu0 0
    %575 = vmatpush.bf16.msra.mxu0 %v551
    %576 = vmatpush.bf16.msra.mxu0 %v550
    %577 = vmatmul.bf16.gmra.mxu0 %v558
    %v578 = vpop.f32.mrf.mxu0
    %v579 = vadd.f32 0.0, %v578
    %v580 = vpop.f32.mrf.mxu0
    %v581 = vadd.f32 0.0, %v580
    %582 = vmatmul.bf16.gmra.mxu0 %v561
    %v583 = vpop.f32.mrf.mxu0
    %v584 = vadd.f32 0.0, %v583
    %v585 = vpop.f32.mrf.mxu0
    %v586 = vadd.f32 0.0, %v585
    %587 = vmatmul.bf16.gmra.mxu0 %v564
    %v588 = vpop.f32.mrf.mxu0
    %v589 = vadd.f32 0.0, %v588
    %v590 = vpop.f32.mrf.mxu0
    %v591 = vadd.f32 0.0, %v590
    %592 = vmatmul.bf16.gmra.mxu0 %v567
    %v593 = vpop.f32.mrf.mxu0
    %v594 = vadd.f32 0.0, %v593
    %v595 = vpop.f32.mrf.mxu0
    %v596 = vadd.f32 0.0, %v595
    %597 = vdwg.mxu0
    %598 = vmatpush.bf16.msra.mxu0 0
    %599 = vmatpush.bf16.msra.mxu0 0
    %600 = vmatpush.bf16.msra.mxu0 0
    %601 = vmatpush.bf16.msra.mxu0 0
    %602 = vmatpush.bf16.msra.mxu0 0
    %603 = vmatpush.bf16.msra.mxu0 0
    %604 = vmatpush.bf16.msra.mxu0 %v548
    %605 = vmatpush.bf16.msra.mxu0 %v544
    %606 = vmatmul.bf16.gmra.mxu0 %v558
    %v607 = vpop.f32.mrf.mxu0
    %v608 = vadd.f32 0.0, %v607
    %v609 = vpop.f32.mrf.mxu0
    %v610 = vadd.f32 0.0, %v609
    %611 = vmatmul.bf16.gmra.mxu0 %v561
    %v612 = vpop.f32.mrf.mxu0
    %v613 = vadd.f32 0.0, %v612
    %v614 = vpop.f32.mrf.mxu0
    %v615 = vadd.f32 0.0, %v614
    %616 = vmatmul.bf16.gmra.mxu0 %v564
    %v617 = vpop.f32.mrf.mxu0
    %v618 = vadd.f32 0.0, %v617
    %v619 = vpop.f32.mrf.mxu0
    %v620 = vadd.f32 0.0, %v619
    %621 = vmatmul.bf16.gmra.mxu0 %v567
    %v622 = vpop.f32.mrf.mxu0
    %v623 = vadd.f32 0.0, %v622
    %v624 = vpop.f32.mrf.mxu0
    %v625 = vadd.f32 0.0, %v624
    %626 = vdwg.mxu0
    %v635 = vunpack.c.l.b16 %v488
    %v636 = vunpack.c.l.b16 %v489
    %v637 = vunpack.c.l.b16 %v490
    %v638 = vunpack.c.l.b16 %v491
    %v639 = vunpack.c.l.b16 %v492
    %v640 = vunpack.c.l.b16 %v493
    %v641 = vunpack.c.l.b16 %v494
    %v642 = vunpack.c.l.b16 %v495
    %v643 = vpack.c.b16 %v636, %v635
    %v644 = vpack.c.b16 %v638, %v637
    %v645 = vpack.c.b16 %v640, %v639
    %v646 = vpack.c.b16 %v642, %v641
    %v652 = vsel %vm556, %v643, 0
    %v655 = vsel %vm556, %v644, 0
    %v658 = vsel %vm556, %v645, 0
    %v661 = vsel %vm556, %v646, 0
    %663 = vmatpush.bf16.msra.mxu0 0
    %664 = vmatpush.bf16.msra.mxu0 0
    %665 = vmatpush.bf16.msra.mxu0 0
    %666 = vmatpush.bf16.msra.mxu0 0
    %667 = vmatpush.bf16.msra.mxu0 0
    %668 = vmatpush.bf16.msra.mxu0 0
    %669 = vmatpush.bf16.msra.mxu0 %v539
    %670 = vmatpush.bf16.msra.mxu0 %v537
    %671 = vmatmul.bf16.gmra.mxu0 %v652
    %v672 = vpop.f32.mrf.mxu0
    %v673 = vadd.f32 %v579, %v672
    %v674 = vpop.f32.mrf.mxu0
    %v675 = vadd.f32 %v581, %v674
    %676 = vmatmul.bf16.gmra.mxu0 %v655
    %v677 = vpop.f32.mrf.mxu0
    %v678 = vadd.f32 %v584, %v677
    %v679 = vpop.f32.mrf.mxu0
    %v680 = vadd.f32 %v586, %v679
    %681 = vmatmul.bf16.gmra.mxu0 %v658
    %v682 = vpop.f32.mrf.mxu0
    %v683 = vadd.f32 %v589, %v682
    %v684 = vpop.f32.mrf.mxu0
    %v685 = vadd.f32 %v591, %v684
    %686 = vmatmul.bf16.gmra.mxu0 %v661
    %v687 = vpop.f32.mrf.mxu0
    %v688 = vadd.f32 %v594, %v687
    %v689 = vpop.f32.mrf.mxu0
    %v690 = vadd.f32 %v596, %v689
    %691 = vdwg.mxu0
    %692 = vmatpush.bf16.msra.mxu0 0
    %693 = vmatpush.bf16.msra.mxu0 0
    %694 = vmatpush.bf16.msra.mxu0 0
    %695 = vmatpush.bf16.msra.mxu0 0
    %696 = vmatpush.bf16.msra.mxu0 0
    %697 = vmatpush.bf16.msra.mxu0 0
    %698 = vmatpush.bf16.msra.mxu0 %v540
    %699 = vmatpush.bf16.msra.mxu0 %v538
    %700 = vmatmul.bf16.gmra.mxu0 %v652
    %v701 = vpop.f32.mrf.mxu0
    %v702 = vadd.f32 %v608, %v701
    %v703 = vpop.f32.mrf.mxu0
    %v704 = vadd.f32 %v610, %v703
    %705 = vmatmul.bf16.gmra.mxu0 %v655
    %v706 = vpop.f32.mrf.mxu0
    %v707 = vadd.f32 %v613, %v706
    %v708 = vpop.f32.mrf.mxu0
    %v709 = vadd.f32 %v615, %v708
    %710 = vmatmul.bf16.gmra.mxu0 %v658
    %v711 = vpop.f32.mrf.mxu0
    %v712 = vadd.f32 %v618, %v711
    %v713 = vpop.f32.mrf.mxu0
    %v714 = vadd.f32 %v620, %v713
    %715 = vmatmul.bf16.gmra.mxu0 %v661
    %v716 = vpop.f32.mrf.mxu0
    %v717 = vadd.f32 %v623, %v716
    %v718 = vpop.f32.mrf.mxu0
    %v719 = vadd.f32 %v625, %v718
    %720 = vdwg.mxu0
    %s721 = scalar_lea.vmem %s4, 64
    %v722 = vld [vmem:[%s721] sm:$0xf]
    %v723 = vld [vmem:[%s721 + $0x4] sm:$0xf]
    %v724 = vld [vmem:[%s721 + $0x8] sm:$0xf]
    %v725 = vld [vmem:[%s721 + $0xc] sm:$0xf]
    %v726 = vld [vmem:[%s721 + $0x10] sm:$0xf]
    %v727 = vld [vmem:[%s721 + $0x14] sm:$0xf]
    %v728 = vld [vmem:[%s721 + $0x18] sm:$0xf]
    %v729 = vld [vmem:[%s721 + $0x1c] sm:$0xf]
    %v738 = vunpack.c.l.b16 %v722
    %v739 = vunpack.c.l.b16 %v723
    %v740 = vunpack.c.l.b16 %v724
    %v741 = vunpack.c.l.b16 %v725
    %v742 = vunpack.c.l.b16 %v726
    %v743 = vunpack.c.l.b16 %v727
    %v744 = vunpack.c.l.b16 %v728
    %v745 = vunpack.c.l.b16 %v729
    %v746 = vpack.c.b16 %v739, %v738
    %v747 = vpack.c.b16 %v741, %v740
    %v748 = vpack.c.b16 %v743, %v742
    %v749 = vpack.c.b16 %v745, %v744
    %750 = vrot.lane.b32.xlu0 %v537, 122
    %v751 = vpop.permute.xlu0 %750
    %752 = vrot.lane.b32.xlu0 %v538, 122
    %v753 = vpop.permute.xlu0 %752
    %754 = vrot.lane.b32.xlu0 %v539, 122
    %v755 = vpop.permute.xlu0 %754
    %756 = vrot.lane.b32.xlu0 %v540, 122
    %v757 = vpop.permute.xlu0 %756
    %vm758 = vcmask 998400
    %v759 = vsel %vm758, %v751, %v753
    %v760 = vsel %vm758, %v755, %v757
    %v766 = vsel %vm556, %v746, 0
    %v769 = vsel %vm556, %v747, 0
    %v772 = vsel %vm556, %v748, 0
    %v775 = vsel %vm556, %v749, 0
    %777 = vmatpush.bf16.msra.mxu0 0
    %778 = vmatpush.bf16.msra.mxu0 0
    %779 = vmatpush.bf16.msra.mxu0 0
    %780 = vmatpush.bf16.msra.mxu0 0
    %781 = vmatpush.bf16.msra.mxu0 0
    %782 = vmatpush.bf16.msra.mxu0 0
    %783 = vmatpush.bf16.msra.mxu0 %v760
    %784 = vmatpush.bf16.msra.mxu0 %v759
    %785 = vmatmul.bf16.gmra.mxu0 %v766
    %v786 = vpop.f32.mrf.mxu0
    %v787 = vadd.f32 0.0, %v786
    %v788 = vpop.f32.mrf.mxu0
    %v789 = vadd.f32 0.0, %v788
    %790 = vmatmul.bf16.gmra.mxu0 %v769
    %v791 = vpop.f32.mrf.mxu0
    %v792 = vadd.f32 0.0, %v791
    %v793 = vpop.f32.mrf.mxu0
    %v794 = vadd.f32 0.0, %v793
    %795 = vmatmul.bf16.gmra.mxu0 %v772
    %v796 = vpop.f32.mrf.mxu0
    %v797 = vadd.f32 0.0, %v796
    %v798 = vpop.f32.mrf.mxu0
    %v799 = vadd.f32 0.0, %v798
    %800 = vmatmul.bf16.gmra.mxu0 %v775
    %v801 = vpop.f32.mrf.mxu0
    %v802 = vadd.f32 0.0, %v801
    %v803 = vpop.f32.mrf.mxu0
    %v804 = vadd.f32 0.0, %v803
    %805 = vdwg.mxu0
    %806 = vmatpush.bf16.msra.mxu0 0
    %807 = vmatpush.bf16.msra.mxu0 0
    %808 = vmatpush.bf16.msra.mxu0 0
    %809 = vmatpush.bf16.msra.mxu0 0
    %810 = vmatpush.bf16.msra.mxu0 0
    %811 = vmatpush.bf16.msra.mxu0 0
    %812 = vmatpush.bf16.msra.mxu0 %v757
    %813 = vmatpush.bf16.msra.mxu0 %v753
    %814 = vmatmul.bf16.gmra.mxu0 %v766
    %v815 = vpop.f32.mrf.mxu0
    %v816 = vadd.f32 0.0, %v815
    %v817 = vpop.f32.mrf.mxu0
    %v818 = vadd.f32 0.0, %v817
    %819 = vmatmul.bf16.gmra.mxu0 %v769
    %v820 = vpop.f32.mrf.mxu0
    %v821 = vadd.f32 0.0, %v820
    %v822 = vpop.f32.mrf.mxu0
    %v823 = vadd.f32 0.0, %v822
    %824 = vmatmul.bf16.gmra.mxu0 %v772
    %v825 = vpop.f32.mrf.mxu0
    %v826 = vadd.f32 0.0, %v825
    %v827 = vpop.f32.mrf.mxu0
    %v828 = vadd.f32 0.0, %v827
    %829 = vmatmul.bf16.gmra.mxu0 %v775
    %v830 = vpop.f32.mrf.mxu0
    %v831 = vadd.f32 0.0, %v830
    %v832 = vpop.f32.mrf.mxu0
    %v833 = vadd.f32 0.0, %v832
    %834 = vdwg.mxu0
    %v835 = vadd.f32 %v673, %v787
    %v836 = vadd.f32 %v702, %v816
    %v837 = vadd.f32 %v675, %v789
    %v838 = vadd.f32 %v704, %v818
    %v839 = vadd.f32 %v678, %v792
    %v840 = vadd.f32 %v707, %v821
    %v841 = vadd.f32 %v680, %v794
    %v842 = vadd.f32 %v709, %v823
    %v843 = vadd.f32 %v683, %v797
    %v844 = vadd.f32 %v712, %v826
    %v845 = vadd.f32 %v685, %v799
    %v846 = vadd.f32 %v714, %v828
    %v847 = vadd.f32 %v688, %v802
    %v848 = vadd.f32 %v717, %v831
    %v849 = vadd.f32 %v690, %v804
    %v850 = vadd.f32 %v719, %v833
    %vm851 = vcmask 130048
    %v852 = vsel %vm851, %v836, 0.0
    %v853 = vadd.f32 %v835, %v852
    %854 = vadd.xlane.f32.xlu0 %v853
    %v855 = vpop.xlane.xlu0 %854
    %v856 = vsel %vm851, %v838, 0.0
    %v857 = vadd.f32 %v837, %v856
    %858 = vadd.xlane.f32.xlu0 %v857
    %v859 = vpop.xlane.xlu0 %858
    %v860 = vsel %vm851, %v840, 0.0
    %v861 = vadd.f32 %v839, %v860
    %862 = vadd.xlane.f32.xlu0 %v861
    %v863 = vpop.xlane.xlu0 %862
    %v864 = vsel %vm851, %v842, 0.0
    %v865 = vadd.f32 %v841, %v864
    %866 = vadd.xlane.f32.xlu0 %v865
    %v867 = vpop.xlane.xlu0 %866
    %v868 = vsel %vm851, %v844, 0.0
    %v869 = vadd.f32 %v843, %v868
    %870 = vadd.xlane.f32.xlu0 %v869
    %v871 = vpop.xlane.xlu0 %870
    %v872 = vsel %vm851, %v846, 0.0
    %v873 = vadd.f32 %v845, %v872
    %874 = vadd.xlane.f32.xlu0 %v873
    %v875 = vpop.xlane.xlu0 %874
    %v876 = vsel %vm851, %v848, 0.0
    %v877 = vadd.f32 %v847, %v876
    %878 = vadd.xlane.f32.xlu0 %v877
    %v879 = vpop.xlane.xlu0 %878
    %v880 = vsel %vm851, %v850, 0.0
    %v881 = vadd.f32 %v849, %v880
    %882 = vadd.xlane.f32.xlu0 %v881
    %v883 = vpop.xlane.xlu0 %882
    %v884 = vmul.f32 %v835, %v835
    %v885 = vmul.f32 %v836, %v836
    %v886 = vmul.f32 %v837, %v837
    %v887 = vmul.f32 %v838, %v838
    %v888 = vmul.f32 %v839, %v839
    %v889 = vmul.f32 %v840, %v840
    %v890 = vmul.f32 %v841, %v841
    %v891 = vmul.f32 %v842, %v842
    %v892 = vmul.f32 %v843, %v843
    %v893 = vmul.f32 %v844, %v844
    %v894 = vmul.f32 %v845, %v845
    %v895 = vmul.f32 %v846, %v846
    %v896 = vmul.f32 %v847, %v847
    %v897 = vmul.f32 %v848, %v848
    %v898 = vmul.f32 %v849, %v849
    %v899 = vmul.f32 %v850, %v850
    %v900 = vsel %vm851, %v885, 0.0
    %v901 = vadd.f32 %v884, %v900
    %902 = vadd.xlane.f32.xlu0 %v901
    %v903 = vpop.xlane.xlu0 %902
    %v904 = vsel %vm851, %v887, 0.0
    %v905 = vadd.f32 %v886, %v904
    %906 = vadd.xlane.f32.xlu0 %v905
    %v907 = vpop.xlane.xlu0 %906
    %v908 = vsel %vm851, %v889, 0.0
    %v909 = vadd.f32 %v888, %v908
    %910 = vadd.xlane.f32.xlu0 %v909
    %v911 = vpop.xlane.xlu0 %910
    %v912 = vsel %vm851, %v891, 0.0
    %v913 = vadd.f32 %v890, %v912
    %914 = vadd.xlane.f32.xlu0 %v913
    %v915 = vpop.xlane.xlu0 %914
    %v916 = vsel %vm851, %v893, 0.0
    %v917 = vadd.f32 %v892, %v916
    %918 = vadd.xlane.f32.xlu0 %v917
    %v919 = vpop.xlane.xlu0 %918
    %v920 = vsel %vm851, %v895, 0.0
    %v921 = vadd.f32 %v894, %v920
    %922 = vadd.xlane.f32.xlu0 %v921
    %v923 = vpop.xlane.xlu0 %922
    %v924 = vsel %vm851, %v897, 0.0
    %v925 = vadd.f32 %v896, %v924
    %926 = vadd.xlane.f32.xlu0 %v925
    %v927 = vpop.xlane.xlu0 %926
    %v928 = vsel %vm851, %v899, 0.0
    %v929 = vadd.f32 %v898, %v928
    %930 = vadd.xlane.f32.xlu0 %v929
    %v931 = vpop.xlane.xlu0 %930
    %v932 = vmul.f32 %v855, 0.0069444445
    %v933 = vmul.f32 %v859, 0.0069444445
    %v934 = vmul.f32 %v863, 0.0069444445
    %v935 = vmul.f32 %v867, 0.0069444445
    %v936 = vmul.f32 %v871, 0.0069444445
    %v937 = vmul.f32 %v875, 0.0069444445
    %v938 = vmul.f32 %v879, 0.0069444445
    %v939 = vmul.f32 %v883, 0.0069444445
    %v940 = vmul.f32 %v903, 0.0069444445
    %v941 = vmul.f32 %v907, 0.0069444445
    %v942 = vmul.f32 %v911, 0.0069444445
    %v943 = vmul.f32 %v915, 0.0069444445
    %v944 = vmul.f32 %v919, 0.0069444445
    %v945 = vmul.f32 %v923, 0.0069444445
    %v946 = vmul.f32 %v927, 0.0069444445
    %v947 = vmul.f32 %v931, 0.0069444445
    %v948 = vmul.f32 %v932, %v932
    %v949 = vmul.f32 %v933, %v933
    %v950 = vmul.f32 %v934, %v934
    %v951 = vmul.f32 %v935, %v935
    %v952 = vmul.f32 %v936, %v936
    %v953 = vmul.f32 %v937, %v937
    %v954 = vmul.f32 %v938, %v938
    %v955 = vmul.f32 %v939, %v939
    %v956 = vsub.f32 %v940, %v948
    %v957 = vsub.f32 %v941, %v949
    %v958 = vsub.f32 %v942, %v950
    %v959 = vsub.f32 %v943, %v951
    %v960 = vsub.f32 %v944, %v952
    %v961 = vsub.f32 %v945, %v953
    %v962 = vsub.f32 %v946, %v954
    %v963 = vsub.f32 %v947, %v955
    %v964 = vadd.f32 %v956, 1e-05
    %v965 = vadd.f32 %v957, 1e-05
    %v966 = vadd.f32 %v958, 1e-05
    %v967 = vadd.f32 %v959, 1e-05
    %v968 = vadd.f32 %v960, 1e-05
    %v969 = vadd.f32 %v961, 1e-05
    %v970 = vadd.f32 %v962, 1e-05
    %v971 = vadd.f32 %v963, 1e-05
    %v972 = vrsqrt.pop %v964
    %v973 = vmul.f32 %v972, %v964
    %v974 = vmul.f32 %v973, %v972
    %v975 = vmul.f32 0.5, %v974
    %v976 = vsub.f32 1.5, %v975
    %v977 = vmul.f32 %v972, %v976
    %vm978 = vweird.f32 %v964
    %vm979 = vweird.f32 %v972
    %vm980 = vmor %vm978, %vm979
    %v981 = vsel %vm980, %v972, %v977
    %v982 = vrsqrt.pop %v965
    %v983 = vmul.f32 %v982, %v965
    %v984 = vmul.f32 %v983, %v982
    %v985 = vmul.f32 0.5, %v984
    %v986 = vsub.f32 1.5, %v985
    %v987 = vmul.f32 %v982, %v986
    %vm988 = vweird.f32 %v965
    %vm989 = vweird.f32 %v982
    %vm990 = vmor %vm988, %vm989
    %v991 = vsel %vm990, %v982, %v987
    %v992 = vrsqrt.pop %v966
    %v993 = vmul.f32 %v992, %v966
    %v994 = vmul.f32 %v993, %v992
    %v995 = vmul.f32 0.5, %v994
    %v996 = vsub.f32 1.5, %v995
    %v997 = vmul.f32 %v992, %v996
    %vm998 = vweird.f32 %v966
    %vm999 = vweird.f32 %v992
    %vm1000 = vmor %vm998, %vm999
    %v1001 = vsel %vm1000, %v992, %v997
    %v1002 = vrsqrt.pop %v967
    %v1003 = vmul.f32 %v1002, %v967
    %v1004 = vmul.f32 %v1003, %v1002
    %v1005 = vmul.f32 0.5, %v1004
    %v1006 = vsub.f32 1.5, %v1005
    %v1007 = vmul.f32 %v1002, %v1006
    %vm1008 = vweird.f32 %v967
    %vm1009 = vweird.f32 %v1002
    %vm1010 = vmor %vm1008, %vm1009
    %v1011 = vsel %vm1010, %v1002, %v1007
    %v1012 = vrsqrt.pop %v968
    %v1013 = vmul.f32 %v1012, %v968
    %v1014 = vmul.f32 %v1013, %v1012
    %v1015 = vmul.f32 0.5, %v1014
    %v1016 = vsub.f32 1.5, %v1015
    %v1017 = vmul.f32 %v1012, %v1016
    %vm1018 = vweird.f32 %v968
    %vm1019 = vweird.f32 %v1012
    %vm1020 = vmor %vm1018, %vm1019
    %v1021 = vsel %vm1020, %v1012, %v1017
    %v1022 = vrsqrt.pop %v969
    %v1023 = vmul.f32 %v1022, %v969
    %v1024 = vmul.f32 %v1023, %v1022
    %v1025 = vmul.f32 0.5, %v1024
    %v1026 = vsub.f32 1.5, %v1025
    %v1027 = vmul.f32 %v1022, %v1026
    %vm1028 = vweird.f32 %v969
    %vm1029 = vweird.f32 %v1022
    %vm1030 = vmor %vm1028, %vm1029
    %v1031 = vsel %vm1030, %v1022, %v1027
    %v1032 = vrsqrt.pop %v970
    %v1033 = vmul.f32 %v1032, %v970
    %v1034 = vmul.f32 %v1033, %v1032
    %v1035 = vmul.f32 0.5, %v1034
    %v1036 = vsub.f32 1.5, %v1035
    %v1037 = vmul.f32 %v1032, %v1036
    %vm1038 = vweird.f32 %v970
    %vm1039 = vweird.f32 %v1032
    %vm1040 = vmor %vm1038, %vm1039
    %v1041 = vsel %vm1040, %v1032, %v1037
    %v1042 = vrsqrt.pop %v971
    %v1043 = vmul.f32 %v1042, %v971
    %v1044 = vmul.f32 %v1043, %v1042
    %v1045 = vmul.f32 0.5, %v1044
    %v1046 = vsub.f32 1.5, %v1045
    %v1047 = vmul.f32 %v1042, %v1046
    %vm1048 = vweird.f32 %v971
    %vm1049 = vweird.f32 %v1042
    %vm1050 = vmor %vm1048, %vm1049
    %v1051 = vsel %vm1050, %v1042, %v1047
    %v1052 = vld [vmem:[%s5] sm:$0xff]
    %v1053 = vld [vmem:[%s5 + $0x8] sm:$0xff]
    %v1054 = vld [vmem:[%s5 + $0x10] sm:$0xff]
    %v1055 = vld [vmem:[%s5 + $0x18] sm:$0xff]
    %v1056 = vld [vmem:[%s5 + $0x20] sm:$0xff]
    %v1057 = vld [vmem:[%s5 + $0x28] sm:$0xff]
    %v1058 = vld [vmem:[%s5 + $0x30] sm:$0xff]
    %v1059 = vld [vmem:[%s5 + $0x38] sm:$0xff]
    %v1060 = vmul.f32 %v1052, %v981
    %v1061 = vmul.f32 %v1053, %v991
    %v1062 = vmul.f32 %v1054, %v1001
    %v1063 = vmul.f32 %v1055, %v1011
    %v1064 = vmul.f32 %v1056, %v1021
    %v1065 = vmul.f32 %v1057, %v1031
    %v1066 = vmul.f32 %v1058, %v1041
    %v1067 = vmul.f32 %v1059, %v1051
    %v1068 = vld [vmem:[%s6] sm:$0xff]
    %v1069 = vld [vmem:[%s6 + $0x8] sm:$0xff]
    %v1070 = vld [vmem:[%s6 + $0x10] sm:$0xff]
    %v1071 = vld [vmem:[%s6 + $0x18] sm:$0xff]
    %v1072 = vld [vmem:[%s6 + $0x20] sm:$0xff]
    %v1073 = vld [vmem:[%s6 + $0x28] sm:$0xff]
    %v1074 = vld [vmem:[%s6 + $0x30] sm:$0xff]
    %v1075 = vld [vmem:[%s6 + $0x38] sm:$0xff]
    %v1076 = vmul.f32 %v932, %v1060
    %v1077 = vmul.f32 %v933, %v1061
    %v1078 = vmul.f32 %v934, %v1062
    %v1079 = vmul.f32 %v935, %v1063
    %v1080 = vmul.f32 %v936, %v1064
    %v1081 = vmul.f32 %v937, %v1065
    %v1082 = vmul.f32 %v938, %v1066
    %v1083 = vmul.f32 %v939, %v1067
    %v1084 = vsub.f32 %v1068, %v1076
    %v1085 = vsub.f32 %v1069, %v1077
    %v1086 = vsub.f32 %v1070, %v1078
    %v1087 = vsub.f32 %v1071, %v1079
    %v1088 = vsub.f32 %v1072, %v1080
    %v1089 = vsub.f32 %v1073, %v1081
    %v1090 = vsub.f32 %v1074, %v1082
    %v1091 = vsub.f32 %v1075, %v1083
    %1093 = vset.pattern.permute.xlu0 0
    %1094 = vperm.xlu0 %1093, %v1060
    %v1095 = vpop.permute.xlu0 %1094
    %1098 = vset.pattern.permute.xlu0 0
    %1099 = vperm.xlu0 %1098, %v1061
    %v1100 = vpop.permute.xlu0 %1099
    %1103 = vset.pattern.permute.xlu0 0
    %1104 = vperm.xlu0 %1103, %v1062
    %v1105 = vpop.permute.xlu0 %1104
    %1108 = vset.pattern.permute.xlu0 0
    %1109 = vperm.xlu0 %1108, %v1063
    %v1110 = vpop.permute.xlu0 %1109
    %1113 = vset.pattern.permute.xlu0 0
    %1114 = vperm.xlu0 %1113, %v1064
    %v1115 = vpop.permute.xlu0 %1114
    %1118 = vset.pattern.permute.xlu0 0
    %1119 = vperm.xlu0 %1118, %v1065
    %v1120 = vpop.permute.xlu0 %1119
    %1123 = vset.pattern.permute.xlu0 0
    %1124 = vperm.xlu0 %1123, %v1066
    %v1125 = vpop.permute.xlu0 %1124
    %1128 = vset.pattern.permute.xlu0 0
    %1129 = vperm.xlu0 %1128, %v1067
    %v1130 = vpop.permute.xlu0 %1129
    %v1132 = vmul.f32 %v835, %v1095
    %v1133 = vmul.f32 %v836, %v1095
    %v1134 = vmul.f32 %v837, %v1100
    %v1135 = vmul.f32 %v838, %v1100
    %v1136 = vmul.f32 %v839, %v1105
    %v1137 = vmul.f32 %v840, %v1105
    %v1138 = vmul.f32 %v841, %v1110
    %v1139 = vmul.f32 %v842, %v1110
    %v1140 = vmul.f32 %v843, %v1115
    %v1141 = vmul.f32 %v844, %v1115
    %v1142 = vmul.f32 %v845, %v1120
    %v1143 = vmul.f32 %v846, %v1120
    %v1144 = vmul.f32 %v847, %v1125
    %v1145 = vmul.f32 %v848, %v1125
    %v1146 = vmul.f32 %v849, %v1130
    %v1147 = vmul.f32 %v850, %v1130
    %1149 = vset.pattern.permute.xlu0 0
    %1150 = vperm.xlu0 %1149, %v1084
    %v1151 = vpop.permute.xlu0 %1150
    %1154 = vset.pattern.permute.xlu0 0
    %1155 = vperm.xlu0 %1154, %v1085
    %v1156 = vpop.permute.xlu0 %1155
    %1159 = vset.pattern.permute.xlu0 0
    %1160 = vperm.xlu0 %1159, %v1086
    %v1161 = vpop.permute.xlu0 %1160
    %1164 = vset.pattern.permute.xlu0 0
    %1165 = vperm.xlu0 %1164, %v1087
    %v1166 = vpop.permute.xlu0 %1165
    %1169 = vset.pattern.permute.xlu0 0
    %1170 = vperm.xlu0 %1169, %v1088
    %v1171 = vpop.permute.xlu0 %1170
    %1174 = vset.pattern.permute.xlu0 0
    %1175 = vperm.xlu0 %1174, %v1089
    %v1176 = vpop.permute.xlu0 %1175
    %1179 = vset.pattern.permute.xlu0 0
    %1180 = vperm.xlu0 %1179, %v1090
    %v1181 = vpop.permute.xlu0 %1180
    %1184 = vset.pattern.permute.xlu0 0
    %1185 = vperm.xlu0 %1184, %v1091
    %v1186 = vpop.permute.xlu0 %1185
    %v1188 = vadd.f32 %v1132, %v1151
    %v1189 = vadd.f32 %v1133, %v1151
    %v1190 = vadd.f32 %v1134, %v1156
    %v1191 = vadd.f32 %v1135, %v1156
    %v1192 = vadd.f32 %v1136, %v1161
    %v1193 = vadd.f32 %v1137, %v1161
    %v1194 = vadd.f32 %v1138, %v1166
    %v1195 = vadd.f32 %v1139, %v1166
    %v1196 = vadd.f32 %v1140, %v1171
    %v1197 = vadd.f32 %v1141, %v1171
    %v1198 = vadd.f32 %v1142, %v1176
    %v1199 = vadd.f32 %v1143, %v1176
    %v1200 = vadd.f32 %v1144, %v1181
    %v1201 = vadd.f32 %v1145, %v1181
    %v1202 = vadd.f32 %v1146, %v1186
    %v1203 = vadd.f32 %v1147, %v1186
    %v1204 = vmax.f32 %v1188, 0.0
    %v1205 = vmax.f32 %v1189, 0.0
    %v1206 = vmax.f32 %v1190, 0.0
    %v1207 = vmax.f32 %v1191, 0.0
    %v1208 = vmax.f32 %v1192, 0.0
    %v1209 = vmax.f32 %v1193, 0.0
    %v1210 = vmax.f32 %v1194, 0.0
    %v1211 = vmax.f32 %v1195, 0.0
    %v1212 = vmax.f32 %v1196, 0.0
    %v1213 = vmax.f32 %v1197, 0.0
    %v1214 = vmax.f32 %v1198, 0.0
    %v1215 = vmax.f32 %v1199, 0.0
    %v1216 = vmax.f32 %v1200, 0.0
    %v1217 = vmax.f32 %v1201, 0.0
    %v1218 = vmax.f32 %v1202, 0.0
    %v1219 = vmax.f32 %v1203, 0.0
    %v1220 = vld [vmem:[%s7] sm:$0xff]
    %v1221 = vld [vmem:[%s7 + $0x8] sm:$0xff]
    %v1222 = vld [vmem:[%s7 + $0x10] sm:$0xff]
    %v1223 = vld [vmem:[%s7 + $0x18] sm:$0xff]
    %v1224 = vld [vmem:[%s7 + $0x20] sm:$0xff]
    %v1225 = vld [vmem:[%s7 + $0x28] sm:$0xff]
    %v1226 = vld [vmem:[%s7 + $0x30] sm:$0xff]
    %v1227 = vld [vmem:[%s7 + $0x38] sm:$0xff]
    %v1228 = vld [vmem:[%s7 + $0x40] sm:$0xff]
    %v1229 = vld [vmem:[%s7 + $0x48] sm:$0xff]
    %v1230 = vld [vmem:[%s7 + $0x50] sm:$0xff]
    %v1231 = vld [vmem:[%s7 + $0x58] sm:$0xff]
    %v1232 = vld [vmem:[%s7 + $0x60] sm:$0xff]
    %v1233 = vld [vmem:[%s7 + $0x68] sm:$0xff]
    %v1234 = vld [vmem:[%s7 + $0x70] sm:$0xff]
    %v1235 = vld [vmem:[%s7 + $0x78] sm:$0xff]
    %v1236 = vmul.f32 %v1204, %v1220
    %v1237 = vmul.f32 %v1205, %v1221
    %v1238 = vmul.f32 %v1206, %v1222
    %v1239 = vmul.f32 %v1207, %v1223
    %v1240 = vmul.f32 %v1208, %v1224
    %v1241 = vmul.f32 %v1209, %v1225
    %v1242 = vmul.f32 %v1210, %v1226
    %v1243 = vmul.f32 %v1211, %v1227
    %v1244 = vmul.f32 %v1212, %v1228
    %v1245 = vmul.f32 %v1213, %v1229
    %v1246 = vmul.f32 %v1214, %v1230
    %v1247 = vmul.f32 %v1215, %v1231
    %v1248 = vmul.f32 %v1216, %v1232
    %v1249 = vmul.f32 %v1217, %v1233
    %v1250 = vmul.f32 %v1218, %v1234
    %v1251 = vmul.f32 %v1219, %v1235
    %v1252 = vadd.f32 %v1236, %v1238
    %v1253 = vadd.f32 %v1252, %v1240
    %v1254 = vadd.f32 %v1253, %v1242
    %v1255 = vadd.f32 %v1254, %v1244
    %v1256 = vadd.f32 %v1255, %v1246
    %v1257 = vadd.f32 %v1256, %v1248
    %v1258 = vadd.f32 %v1257, %v1250
    %v1259 = vrot.slane %v1258, 4
    %v1260 = vadd.f32 %v1258, %v1259
    %v1261 = vrot.slane %v1260, 2
    %v1262 = vadd.f32 %v1260, %v1261
    %v1263 = vrot.slane %v1262, 1
    %v1264 = vadd.f32 %v1262, %v1263
    %v1265 = vsel %vm851, %v1237, 0.0
    %v1266 = vsel %vm851, %v1239, 0.0
    %v1267 = vadd.f32 %v1265, %v1266
    %v1268 = vsel %vm851, %v1241, 0.0
    %v1269 = vadd.f32 %v1267, %v1268
    %v1270 = vsel %vm851, %v1243, 0.0
    %v1271 = vadd.f32 %v1269, %v1270
    %v1272 = vsel %vm851, %v1245, 0.0
    %v1273 = vadd.f32 %v1271, %v1272
    %v1274 = vsel %vm851, %v1247, 0.0
    %v1275 = vadd.f32 %v1273, %v1274
    %v1276 = vsel %vm851, %v1249, 0.0
    %v1277 = vadd.f32 %v1275, %v1276
    %v1278 = vsel %vm851, %v1251, 0.0
    %v1279 = vadd.f32 %v1277, %v1278
    %v1280 = vrot.slane %v1279, 4
    %v1281 = vadd.f32 %v1279, %v1280
    %v1282 = vrot.slane %v1281, 2
    %v1283 = vadd.f32 %v1281, %v1282
    %v1284 = vrot.slane %v1283, 1
    %v1285 = vadd.f32 %v1283, %v1284
    %v1286 = vld [vmem:[%s8] sm:$0x3]
    %v1288 = vperm.slane %v1286, 0
    %v1289 = vperm.slane %v1286, 1
    %v1292 = vadd.f32 %v1264, %v1288
    %v1293 = vadd.f32 %v1285, %v1289
    %v1294 = vtanh.pop %v1292
    %v1295 = vtanh.pop %v1293
    %v1296 = vperm.slane %v1294, 0
    %v1297 = vperm.slane %v1295, 0
    %v1298 = vmul.f32 %v1204, %v1296
    %v1299 = vmul.f32 %v1205, %v1297
    %v1300 = vmul.f32 %v1206, %v1296
    %v1301 = vmul.f32 %v1207, %v1297
    %v1302 = vmul.f32 %v1208, %v1296
    %v1303 = vmul.f32 %v1209, %v1297
    %v1304 = vmul.f32 %v1210, %v1296
    %v1305 = vmul.f32 %v1211, %v1297
    %v1306 = vmul.f32 %v1212, %v1296
    %v1307 = vmul.f32 %v1213, %v1297
    %v1308 = vmul.f32 %v1214, %v1296
    %v1309 = vmul.f32 %v1215, %v1297
    %v1310 = vmul.f32 %v1216, %v1296
    %v1311 = vmul.f32 %v1217, %v1297
    %v1312 = vmul.f32 %v1218, %v1296
    %v1313 = vmul.f32 %v1219, %v1297
    %vm1314 = vcmask 244736
    %v1315 = vsel %vm1314, %v1298, 0.0
    %1316 = vadd.xlane.f32.xlu0 %v1315
    %v1317 = vpop.xlane.xlu0 %1316
    %v1318 = vsel %vm1314, %v1300, 0.0
    %1319 = vadd.xlane.f32.xlu0 %v1318
    %v1320 = vpop.xlane.xlu0 %1319
    %v1321 = vsel %vm1314, %v1302, 0.0
    %1322 = vadd.xlane.f32.xlu0 %v1321
    %v1323 = vpop.xlane.xlu0 %1322
    %v1324 = vsel %vm1314, %v1304, 0.0
    %1325 = vadd.xlane.f32.xlu0 %v1324
    %v1326 = vpop.xlane.xlu0 %1325
    %v1327 = vsel %vm1314, %v1306, 0.0
    %1328 = vadd.xlane.f32.xlu0 %v1327
    %v1329 = vpop.xlane.xlu0 %1328
    %v1330 = vsel %vm1314, %v1308, 0.0
    %1331 = vadd.xlane.f32.xlu0 %v1330
    %v1332 = vpop.xlane.xlu0 %1331
    %v1333 = vsel %vm1314, %v1310, 0.0
    %1334 = vadd.xlane.f32.xlu0 %v1333
    %v1335 = vpop.xlane.xlu0 %1334
    %v1336 = vsel %vm1314, %v1312, 0.0
    %1337 = vadd.xlane.f32.xlu0 %v1336
    %v1338 = vpop.xlane.xlu0 %1337
    %v1347 = vlaneseq
    %v1348 = vand.u32 %v1347, 127
    %v1349 = vperm.slane %v1317, %v1348
    %v1350 = vadd.s32 %v1348, 4294967288
    %v1351 = vperm.slane %v1320, %v1350
    %vm1352 = vcmask 130112
    %v1353 = vsel %vm1352, %v1351, %v1349
    %v1354 = vadd.s32 %v1348, 4294967280
    %v1355 = vperm.slane %v1323, %v1354
    %vm1356 = vcmask 195712
    %v1357 = vsel %vm1356, %v1355, %v1353
    %v1358 = vadd.s32 %v1348, 4294967272
    %v1359 = vperm.slane %v1326, %v1358
    %vm1360 = vcmask 261312
    %v1361 = vsel %vm1360, %v1359, %v1357
    %v1362 = vadd.s32 %v1348, 4294967264
    %v1363 = vperm.slane %v1329, %v1362
    %vm1364 = vcmask 326912
    %v1365 = vsel %vm1364, %v1363, %v1361
    %v1366 = vadd.s32 %v1348, 4294967256
    %v1367 = vperm.slane %v1332, %v1366
    %vm1368 = vcmask 392512
    %v1369 = vsel %vm1368, %v1367, %v1365
    %v1370 = vadd.s32 %v1348, 4294967248
    %v1371 = vperm.slane %v1335, %v1370
    %vm1372 = vcmask 458112
    %v1373 = vsel %vm1372, %v1371, %v1369
    %v1374 = vadd.s32 %v1348, 4294967240
    %v1375 = vperm.slane %v1338, %v1374
    %vm1376 = vcmask 523712
    %v1377 = vsel %vm1376, %v1375, %v1373
    %vm1379 = vcmask 516096
    %1380 = vst.msk [vmem:[#allocation3] sm:$0x1] %vm1379, %v1377
    %1389 = vrot.lane.b32.xlu0 %v1298, 92
    %v1390 = vpop.permute.xlu0 %1389
    %1391 = vrot.lane.b32.xlu0 %v1300, 92
    %v1392 = vpop.permute.xlu0 %1391
    %1393 = vrot.lane.b32.xlu0 %v1302, 92
    %v1394 = vpop.permute.xlu0 %1393
    %1395 = vrot.lane.b32.xlu0 %v1304, 92
    %v1396 = vpop.permute.xlu0 %1395
    %1397 = vrot.lane.b32.xlu0 %v1306, 92
    %v1398 = vpop.permute.xlu0 %1397
    %1399 = vrot.lane.b32.xlu0 %v1308, 92
    %v1400 = vpop.permute.xlu0 %1399
    %1401 = vrot.lane.b32.xlu0 %v1310, 92
    %v1402 = vpop.permute.xlu0 %1401
    %1403 = vrot.lane.b32.xlu0 %v1312, 92
    %v1404 = vpop.permute.xlu0 %1403
    %v1413 = vsel %vm1314, %v1390, 0.0
    %1414 = vadd.xlane.f32.xlu0 %v1413
    %v1415 = vpop.xlane.xlu0 %1414
    %v1416 = vsel %vm1314, %v1392, 0.0
    %1417 = vadd.xlane.f32.xlu0 %v1416
    %v1418 = vpop.xlane.xlu0 %1417
    %v1419 = vsel %vm1314, %v1394, 0.0
    %1420 = vadd.xlane.f32.xlu0 %v1419
    %v1421 = vpop.xlane.xlu0 %1420
    %v1422 = vsel %vm1314, %v1396, 0.0
    %1423 = vadd.xlane.f32.xlu0 %v1422
    %v1424 = vpop.xlane.xlu0 %1423
    %v1425 = vsel %vm1314, %v1398, 0.0
    %1426 = vadd.xlane.f32.xlu0 %v1425
    %v1427 = vpop.xlane.xlu0 %1426
    %v1428 = vsel %vm1314, %v1400, 0.0
    %1429 = vadd.xlane.f32.xlu0 %v1428
    %v1430 = vpop.xlane.xlu0 %1429
    %v1431 = vsel %vm1314, %v1402, 0.0
    %1432 = vadd.xlane.f32.xlu0 %v1431
    %v1433 = vpop.xlane.xlu0 %1432
    %v1434 = vsel %vm1314, %v1404, 0.0
    %1435 = vadd.xlane.f32.xlu0 %v1434
    %v1436 = vpop.xlane.xlu0 %1435
    %v1445 = vperm.slane %v1415, %v1348
    %v1446 = vperm.slane %v1418, %v1350
    %v1447 = vsel %vm1352, %v1446, %v1445
    %v1448 = vperm.slane %v1421, %v1354
    %v1449 = vsel %vm1356, %v1448, %v1447
    %v1450 = vperm.slane %v1424, %v1358
    %v1451 = vsel %vm1360, %v1450, %v1449
    %v1452 = vperm.slane %v1427, %v1362
    %v1453 = vsel %vm1364, %v1452, %v1451
    %v1454 = vperm.slane %v1430, %v1366
    %v1455 = vsel %vm1368, %v1454, %v1453
    %v1456 = vperm.slane %v1433, %v1370
    %v1457 = vsel %vm1372, %v1456, %v1455
    %v1458 = vperm.slane %v1436, %v1374
    %v1459 = vsel %vm1376, %v1458, %v1457
    %1461 = vst.msk [vmem:[#allocation3 + $0x1] sm:$0x1] %vm1379, %v1459
    %1462 = vrot.lane.b32.xlu0 %v1298, 56
    %v1463 = vpop.permute.xlu0 %1462
    %1464 = vrot.lane.b32.xlu0 %v1300, 56
    %v1465 = vpop.permute.xlu0 %1464
    %1466 = vrot.lane.b32.xlu0 %v1302, 56
    %v1467 = vpop.permute.xlu0 %1466
    %1468 = vrot.lane.b32.xlu0 %v1304, 56
    %v1469 = vpop.permute.xlu0 %1468
    %1470 = vrot.lane.b32.xlu0 %v1306, 56
    %v1471 = vpop.permute.xlu0 %1470
    %1472 = vrot.lane.b32.xlu0 %v1308, 56
    %v1473 = vpop.permute.xlu0 %1472
    %1474 = vrot.lane.b32.xlu0 %v1310, 56
    %v1475 = vpop.permute.xlu0 %1474
    %1476 = vrot.lane.b32.xlu0 %v1312, 56
    %v1477 = vpop.permute.xlu0 %1476
    %v1486 = vsel %vm1314, %v1463, 0.0
    %1487 = vadd.xlane.f32.xlu0 %v1486
    %v1488 = vpop.xlane.xlu0 %1487
    %v1489 = vsel %vm1314, %v1465, 0.0
    %1490 = vadd.xlane.f32.xlu0 %v1489
    %v1491 = vpop.xlane.xlu0 %1490
    %v1492 = vsel %vm1314, %v1467, 0.0
    %1493 = vadd.xlane.f32.xlu0 %v1492
    %v1494 = vpop.xlane.xlu0 %1493
    %v1495 = vsel %vm1314, %v1469, 0.0
    %1496 = vadd.xlane.f32.xlu0 %v1495
    %v1497 = vpop.xlane.xlu0 %1496
    %v1498 = vsel %vm1314, %v1471, 0.0
    %1499 = vadd.xlane.f32.xlu0 %v1498
    %v1500 = vpop.xlane.xlu0 %1499
    %v1501 = vsel %vm1314, %v1473, 0.0
    %1502 = vadd.xlane.f32.xlu0 %v1501
    %v1503 = vpop.xlane.xlu0 %1502
    %v1504 = vsel %vm1314, %v1475, 0.0
    %1505 = vadd.xlane.f32.xlu0 %v1504
    %v1506 = vpop.xlane.xlu0 %1505
    %v1507 = vsel %vm1314, %v1477, 0.0
    %1508 = vadd.xlane.f32.xlu0 %v1507
    %v1509 = vpop.xlane.xlu0 %1508
    %v1518 = vperm.slane %v1488, %v1348
    %v1519 = vperm.slane %v1491, %v1350
    %v1520 = vsel %vm1352, %v1519, %v1518
    %v1521 = vperm.slane %v1494, %v1354
    %v1522 = vsel %vm1356, %v1521, %v1520
    %v1523 = vperm.slane %v1497, %v1358
    %v1524 = vsel %vm1360, %v1523, %v1522
    %v1525 = vperm.slane %v1500, %v1362
    %v1526 = vsel %vm1364, %v1525, %v1524
    %v1527 = vperm.slane %v1503, %v1366
    %v1528 = vsel %vm1368, %v1527, %v1526
    %v1529 = vperm.slane %v1506, %v1370
    %v1530 = vsel %vm1372, %v1529, %v1528
    %v1531 = vperm.slane %v1509, %v1374
    %v1532 = vsel %vm1376, %v1531, %v1530
    %1534 = vst.msk [vmem:[#allocation3 + $0x2] sm:$0x1] %vm1379, %v1532
    %1543 = vrot.lane.b32.xlu0 %v1298, 20
    %v1544 = vpop.permute.xlu0 %1543
    %1545 = vrot.lane.b32.xlu0 %v1299, 20
    %v1546 = vpop.permute.xlu0 %1545
    %1547 = vrot.lane.b32.xlu0 %v1300, 20
    %v1548 = vpop.permute.xlu0 %1547
    %1549 = vrot.lane.b32.xlu0 %v1301, 20
    %v1550 = vpop.permute.xlu0 %1549
    %1551 = vrot.lane.b32.xlu0 %v1302, 20
    %v1552 = vpop.permute.xlu0 %1551
    %1553 = vrot.lane.b32.xlu0 %v1303, 20
    %v1554 = vpop.permute.xlu0 %1553
    %1555 = vrot.lane.b32.xlu0 %v1304, 20
    %v1556 = vpop.permute.xlu0 %1555
    %1557 = vrot.lane.b32.xlu0 %v1305, 20
    %v1558 = vpop.permute.xlu0 %1557
    %1559 = vrot.lane.b32.xlu0 %v1306, 20
    %v1560 = vpop.permute.xlu0 %1559
    %1561 = vrot.lane.b32.xlu0 %v1307, 20
    %v1562 = vpop.permute.xlu0 %1561
    %1563 = vrot.lane.b32.xlu0 %v1308, 20
    %v1564 = vpop.permute.xlu0 %1563
    %1565 = vrot.lane.b32.xlu0 %v1309, 20
    %v1566 = vpop.permute.xlu0 %1565
    %1567 = vrot.lane.b32.xlu0 %v1310, 20
    %v1568 = vpop.permute.xlu0 %1567
    %1569 = vrot.lane.b32.xlu0 %v1311, 20
    %v1570 = vpop.permute.xlu0 %1569
    %1571 = vrot.lane.b32.xlu0 %v1312, 20
    %v1572 = vpop.permute.xlu0 %1571
    %1573 = vrot.lane.b32.xlu0 %v1313, 20
    %v1574 = vpop.permute.xlu0 %1573
    %v1575 = vsel %vm84, %v1544, %v1546
    %v1576 = vsel %vm84, %v1548, %v1550
    %v1577 = vsel %vm84, %v1552, %v1554
    %v1578 = vsel %vm84, %v1556, %v1558
    %v1579 = vsel %vm84, %v1560, %v1562
    %v1580 = vsel %vm84, %v1564, %v1566
    %v1581 = vsel %vm84, %v1568, %v1570
    %v1582 = vsel %vm84, %v1572, %v1574
    %v1591 = vsel %vm1314, %v1575, 0.0
    %1592 = vadd.xlane.f32.xlu0 %v1591
    %v1593 = vpop.xlane.xlu0 %1592
    %v1594 = vsel %vm1314, %v1576, 0.0
    %1595 = vadd.xlane.f32.xlu0 %v1594
    %v1596 = vpop.xlane.xlu0 %1595
    %v1597 = vsel %vm1314, %v1577, 0.0
    %1598 = vadd.xlane.f32.xlu0 %v1597
    %v1599 = vpop.xlane.xlu0 %1598
    %v1600 = vsel %vm1314, %v1578, 0.0
    %1601 = vadd.xlane.f32.xlu0 %v1600
    %v1602 = vpop.xlane.xlu0 %1601
    %v1603 = vsel %vm1314, %v1579, 0.0
    %1604 = vadd.xlane.f32.xlu0 %v1603
    %v1605 = vpop.xlane.xlu0 %1604
    %v1606 = vsel %vm1314, %v1580, 0.0
    %1607 = vadd.xlane.f32.xlu0 %v1606
    %v1608 = vpop.xlane.xlu0 %1607
    %v1609 = vsel %vm1314, %v1581, 0.0
    %1610 = vadd.xlane.f32.xlu0 %v1609
    %v1611 = vpop.xlane.xlu0 %1610
    %v1612 = vsel %vm1314, %v1582, 0.0
    %1613 = vadd.xlane.f32.xlu0 %v1612
    %v1614 = vpop.xlane.xlu0 %1613
    %v1623 = vperm.slane %v1593, %v1348
    %v1624 = vperm.slane %v1596, %v1350
    %v1625 = vsel %vm1352, %v1624, %v1623
    %v1626 = vperm.slane %v1599, %v1354
    %v1627 = vsel %vm1356, %v1626, %v1625
    %v1628 = vperm.slane %v1602, %v1358
    %v1629 = vsel %vm1360, %v1628, %v1627
    %v1630 = vperm.slane %v1605, %v1362
    %v1631 = vsel %vm1364, %v1630, %v1629
    %v1632 = vperm.slane %v1608, %v1366
    %v1633 = vsel %vm1368, %v1632, %v1631
    %v1634 = vperm.slane %v1611, %v1370
    %v1635 = vsel %vm1372, %v1634, %v1633
    %v1636 = vperm.slane %v1614, %v1374
    %v1637 = vsel %vm1376, %v1636, %v1635
    %1639 = vst.msk [vmem:[#allocation3 + $0x3] sm:$0x1] %vm1379, %v1637
    // Predicated region
    $region38: #{memory_model_forward.1} parent=1 // pred_check
      _
    $region39: #{memory_model_forward.1} parent=1 // pred_check_branch
      %1641 = sbr.rel (0) target = $region41
    $region40: #{memory_model_forward.1} parent=1 // pred_region
      %1643 = vsyncadd [#allocation4], 0
      %s1645 = sshll.u32 [#allocation3], 4
      %s1646 = int_to_ptr.vmem [resolvable:$true] %s1645
      %s1647 = sshll.u32 %s9, 4
      %s1648 = int_to_ptr.hbm [resolvable:$true] %s1647
      %1650 = dma.vmem_to_hbm [thread:$0]  %s1646, 64, %s1648, [#allocation4]
    $region41: #{memory_model_forward.1} parent=1 // pred_fallthru
      _
    // Predicated region
    $region42: #{memory_model_forward.1} parent=1 // pred_check
      _
    $region43: #{memory_model_forward.1} parent=1 // pred_check_branch
      %1652 = sbr.rel (0) target = $region45
    $region44: #{memory_model_forward.1} parent=1 // pred_region
      %1654 = dma.done [#allocation4], 64
    $region45: #{memory_model_forward.1} parent=1 // pred_fallthru
      _
    %1655 = vsyncpa [#allocation4], 1

</llo_original>
